<compile_context>
chip_gen: v5e
topology: v5e:2x2
jax: 0.10.0
libtpu: 0.0.40
codegen_flags: <defaults>
</compile_context>

<pallas_src>
import functools

import jax
import jax.numpy as jnp
from jax import lax
from jax.experimental import pallas as pl
from jax.experimental.pallas import tpu as pltpu


def _mha_flash_kernel(*refs, scale, num_heads, head_dim, has_mask, return_probs):
    # refs: inputs (q, k, v[, mask]), outputs (out[, probs]), scratch (m, l, acc).
    q_ref, k_ref, v_ref = refs[0:3]
    idx = 3
    mask_ref = None
    if has_mask:
        mask_ref = refs[idx]
        idx += 1
    out_ref = refs[idx]
    idx += 1
    probs_ref = None
    if return_probs:
        probs_ref = refs[idx]
        idx += 1
    m_sc, l_sc, acc_sc = refs[idx:idx + 3]

    si = pl.program_id(2)
    ns = pl.num_programs(2)

    @pl.when(si == 0)
    def _init():
        m_sc[...] = jnp.full(m_sc.shape, -jnp.inf, dtype=m_sc.dtype)
        l_sc[...] = jnp.zeros(l_sc.shape, dtype=l_sc.dtype)
        acc_sc[...] = jnp.zeros(acc_sc.shape, dtype=acc_sc.dtype)

    q = q_ref[0]                         # (tq, E) in the input dtype (no f32 upcast)
    k = k_ref[0]                         # (tk, E)
    v = v_ref[0]                         # (tk, E)
    if has_mask:
        add_mask = mask_ref[0, 0].astype(jnp.float32)   # (tq, tk), shared by all heads

    d = head_dim
    for h in range(num_heads):           # static unroll; heads batched per block
        q_h = q[:, h * d:(h + 1) * d]    # (tq, D)
        k_h = k[:, h * d:(h + 1) * d]    # (tk, D)
        v_h = v[:, h * d:(h + 1) * d]    # (tk, D)

        # QK^T on the MXU, f32 accumulation, contracting last dims (no k.T).
        s = lax.dot_general(q_h, k_h, (((1,), (1,)), ((), ())),
                            preferred_element_type=jnp.float32) * scale  # (tq, tk)
        if has_mask:
            s = s + add_mask

        # Online softmax update for this head.
        m_prev = m_sc[h]                                            # (tq, 1)
        m_new = jnp.maximum(m_prev, jnp.max(s, axis=-1, keepdims=True))
        alpha = jnp.exp(m_prev - m_new)                             # (tq, 1)
        p = jnp.exp(s - m_new)                                      # (tq, tk) f32
        l_new = alpha * l_sc[h] + jnp.sum(p, axis=-1, keepdims=True)
        pv = lax.dot_general(p.astype(v_h.dtype), v_h, (((1,), (0,)), ((), ())),
                             preferred_element_type=jnp.float32)    # (tq, D)
        acc_sc[h] = alpha * acc_sc[h] + pv
        m_sc[h] = m_new
        l_sc[h] = l_new

        if return_probs:
            # return_probs forces a single S tile (ns == 1), so l_new is final.
            inv_l = pl.reciprocal(l_new, approx=False)
            probs_ref[0, h, :, :] = (p * inv_l).astype(probs_ref.dtype)

    @pl.when(si == ns - 1)
    def _finalize():
        parts = []
        for h in range(num_heads):
            inv_l = pl.reciprocal(l_sc[h], approx=False)            # (tq, 1)
            parts.append((acc_sc[h] * inv_l).astype(out_ref.dtype))
        # Lane-dense (tq, E) writeback into the (B, T, E) output slab.
        out_ref[0] = jnp.concatenate(parts, axis=-1)


def _pick_tile(dim, pref):
    # Largest tile <= pref that divides dim (pref is a multiple of 8/128 so the
    # TPU block constraints hold); fall back to the full dim (always legal).
    if dim <= pref:
        return dim
    if dim % pref == 0:
        return pref
    return dim


def multi_head_attention(query_states, key_states, value_states,
                         num_heads, head_dim,
                         attention_mask=None, causal_attention_mask=None,
                         dropout=0.0, training=True, output_attentions=False):
    """Mirrors MultiHeadAttention.forward -> (attn_output, attn_weights | None)."""
    # TODO(synk): dropout with p > 0 is not implemented in-kernel (the module's
    # default p=0.0 is the identity, which is what this forward pass computes).
    del dropout, training

    bsz, tgt_len, embed_dim = query_states.shape
    src_len = key_states.shape[1]
    assert embed_dim == num_heads * head_dim
    scale = float(head_dim) ** -0.5

    # Combine optional additive masks; keep the (B, 1, T, S) layout (indexed per
    # batch in the BlockSpec; never broadcast over heads in HBM).
    mask = None
    if causal_attention_mask is not None:
        mask = causal_attention_mask
    if attention_mask is not None:
        mask = attention_mask if mask is None else mask + attention_mask
    has_mask = mask is not None

    # Tile sizes: tq is a multiple of 8 (or full T), tk a multiple of 128 (or
    # full S).  When attention weights are requested we need the full row of
    # scores, so use a single S tile.
    tq = _pick_tile(tgt_len, 128)
    tk = src_len if output_attentions else _pick_tile(src_len, 512)
    grid = (bsz, tgt_len // tq, src_len // tk)

    in_specs = [
        pl.BlockSpec((1, tq, embed_dim), lambda b, ti, si: (b, ti, 0)),   # Q (resident across S)
        pl.BlockSpec((1, tk, embed_dim), lambda b, ti, si: (b, si, 0)),   # K
        pl.BlockSpec((1, tk, embed_dim), lambda b, ti, si: (b, si, 0)),   # V
    ]
    inputs = [query_states, key_states, value_states]
    if has_mask:
        in_specs.append(pl.BlockSpec((1, 1, tq, tk), lambda b, ti, si: (b, 0, ti, si)))
        inputs.append(mask)

    out_shapes = [jax.ShapeDtypeStruct((bsz, tgt_len, embed_dim), query_states.dtype)]
    out_specs = [pl.BlockSpec((1, tq, embed_dim), lambda b, ti, si: (b, ti, 0))]
    if output_attentions:
        out_shapes.append(jax.ShapeDtypeStruct(
            (bsz, num_heads, tgt_len, src_len), query_states.dtype))
        out_specs.append(pl.BlockSpec((1, num_heads, tq, src_len),
                                      lambda b, ti, si: (b, 0, ti, 0)))

    scratch_shapes = [
        pltpu.VMEM((num_heads, tq, 1), jnp.float32),          # running max
        pltpu.VMEM((num_heads, tq, 1), jnp.float32),          # running denominator
        pltpu.VMEM((num_heads, tq, head_dim), jnp.float32),   # output accumulator
    ]

    kernel = functools.partial(
        _mha_flash_kernel, scale=scale, num_heads=num_heads, head_dim=head_dim,
        has_mask=has_mask, return_probs=output_attentions)

    # VMEM budget: double-buffered blocks + scratch, capped so the request stays
    # within v7x's 64 MiB physical VMEM (the smallest of v5e/v6e/v7x).
    isz = query_states.dtype.itemsize
    block_bytes = 2 * tq * embed_dim * isz + 2 * tk * embed_dim * isz  # q+out, k+v
    if has_mask:
        block_bytes += tq * tk * mask.dtype.itemsize
    if output_attentions:
        block_bytes += num_heads * tq * src_len * isz
    scratch_bytes = num_heads * tq * (head_dim + 2) * 4
    vmem_limit = int(min(64 * 2**20, max(16 * 2**20, 4 * block_bytes + scratch_bytes)))

    flops = 4 * bsz * num_heads * tgt_len * src_len * head_dim   # QK^T + PV
    transcendentals = bsz * num_heads * tgt_len * src_len        # exp
    bytes_accessed = sum(int(x.size) * x.dtype.itemsize for x in inputs)
    bytes_accessed += bsz * tgt_len * embed_dim * isz
    if output_attentions:
        bytes_accessed += bsz * num_heads * tgt_len * src_len * isz

    results = pl.pallas_call(
        kernel,
        out_shape=tuple(out_shapes),
        grid=grid,
        in_specs=in_specs,
        out_specs=tuple(out_specs),
        scratch_shapes=scratch_shapes,
        compiler_params=pltpu.CompilerParams(
            dimension_semantics=("parallel", "parallel", "arbitrary"),
            vmem_limit_bytes=vmem_limit),
        cost_estimate=pl.CostEstimate(flops=int(flops),
                                      transcendentals=int(transcendentals),
                                      bytes_accessed=int(bytes_accessed)),
    )(*inputs)

    attn_output = results[0]
    attn_weights = results[1] if output_attentions else None
    return attn_output, attn_weights


def _reference(query, key, value, num_heads, head_dim, attention_mask, causal_mask):
    """Pure-JAX mirror of the PyTorch module's forward pass."""
    bsz, tgt_len, embed_dim = query.shape
    src_len = key.shape[1]
    scale = head_dim ** -0.5

    def sh(x, L):
        return (x.reshape(bsz, L, num_heads, head_dim)
                 .transpose(0, 2, 1, 3)
                 .reshape(bsz * num_heads, L, head_dim))

    q = sh(query * scale, tgt_len).astype(jnp.float32)
    k = sh(key, src_len).astype(jnp.float32)
    v = sh(value, src_len).astype(jnp.float32)
    w = jnp.einsum('btd,bsd->bts', q, k)
    w = w.reshape(bsz, num_heads, tgt_len, src_len)
    if causal_mask is not None:
        w = w + causal_mask
    if attention_mask is not None:
        w = w + attention_mask
    w = jax.nn.softmax(w.reshape(bsz * num_heads, tgt_len, src_len), axis=-1)
    out = jnp.einsum('bts,bsd->btd', w, v)
    out = (out.reshape(bsz, num_heads, tgt_len, head_dim)
              .transpose(0, 2, 1, 3)
              .reshape(bsz, tgt_len, embed_dim))
    return out.astype(query.dtype), w.reshape(bsz, num_heads, tgt_len, src_len)


if __name__ == "__main__":
    bsz, num_heads, head_dim, seq = 2, 4, 8, 8
    embed_dim = num_heads * head_dim

    root = jax.random.PRNGKey(0)
    kq, kk, kv = jax.random.split(root, 3)
    query = jax.random.normal(kq, (bsz, seq, embed_dim), dtype=jnp.float32)
    key_s = jax.random.normal(kk, (bsz, seq, embed_dim), dtype=jnp.float32)
    value = jax.random.normal(kv, (bsz, seq, embed_dim), dtype=jnp.float32)

    # Causal additive mask (bsz, 1, T, S): 0 on/below the diagonal, -1e9 above.
    tri = jnp.triu(jnp.full((seq, seq), -1e9, jnp.float32), k=1)
    causal_mask = jnp.broadcast_to(tri[None, None], (bsz, 1, seq, seq))

    # Path 1: causal mask + attention weights requested.
    out, weights = multi_head_attention(
        query, key_s, value, num_heads, head_dim,
        attention_mask=None, causal_attention_mask=causal_mask,
        output_attentions=True)
    jax.block_until_ready((out, weights))

    ref_out, ref_w = _reference(query, key_s, value, num_heads, head_dim,
                                None, causal_mask)
    assert out.shape == (bsz, seq, embed_dim)
    assert weights.shape == (bsz, num_heads, seq, seq)
    assert jnp.allclose(out, ref_out, atol=2e-5, rtol=2e-5)
    assert jnp.allclose(weights, ref_w, atol=2e-5, rtol=2e-5)

    # Path 2: no mask, no attention weights (the module's default call).
    out2, weights2 = multi_head_attention(query, key_s, value, num_heads, head_dim)
    jax.block_until_ready(out2)
    ref_out2, _ = _reference(query, key_s, value, num_heads, head_dim, None, None)
    assert weights2 is None
    assert jnp.allclose(out2, ref_out2, atol=2e-5, rtol=2e-5)

    print("KERNEL_OK")
</pallas_src>

<mosaic_0001>
module attributes {stable_mosaic.version = 11 : i64} {
  func.func @_mha_flash_kernel(%arg0: i32, %arg1: i32, %arg2: i32, %arg3: memref<1x8x32xf32, #tpu.memory_space<vmem>>, %arg4: memref<1x8x32xf32, #tpu.memory_space<vmem>>, %arg5: memref<1x8x32xf32, #tpu.memory_space<vmem>>, %arg6: memref<1x1x8x8xf32, #tpu.memory_space<vmem>>, %arg7: memref<1x8x32xf32, #tpu.memory_space<vmem>>, %arg8: memref<1x4x8x8xf32, #tpu.memory_space<vmem>>, %arg9: memref<4x8x1xf32, #tpu.memory_space<vmem>>, %arg10: memref<4x8x1xf32, #tpu.memory_space<vmem>>, %arg11: memref<4x8x8xf32, #tpu.memory_space<vmem>>) attributes {dimension_semantics = [#tpu.dimension_semantics<parallel>, #tpu.dimension_semantics<parallel>, #tpu.dimension_semantics<arbitrary>], iteration_bounds = array<i64: 2, 1, 1>, scalar_prefetch = 0 : i64, scratch_operands = 3 : i64, tpu.core_type = #tpu.core_type<tc>, window_params = [{transform_indices = @transform_0, window_bounds = array<i64: 1, 8, 32>}, {transform_indices = @transform_1, window_bounds = array<i64: 1, 8, 32>}, {transform_indices = @transform_2, window_bounds = array<i64: 1, 8, 32>}, {transform_indices = @transform_3, window_bounds = array<i64: 1, 1, 8, 8>}, {transform_indices = @transform_4, window_bounds = array<i64: 1, 8, 32>}, {transform_indices = @transform_5, window_bounds = array<i64: 1, 4, 8, 8>}]} {
    %c0_i32 = arith.constant 0 : i32
    %0 = arith.cmpi eq, %arg2, %c0_i32 : i32
    %1 = arith.extui %0 : i1 to i32
    %c0_i32_0 = arith.constant 0 : i32
    %2 = arith.cmpi ne, %1, %c0_i32_0 : i32
    scf.if %2 {
      %cst_119 = arith.constant 0xFF800000 : f32
      %190 = vector.broadcast %cst_119 : f32 to vector<4x8x1xf32>
      %c0_120 = arith.constant 0 : index
      %c0_121 = arith.constant 0 : index
      %c0_122 = arith.constant 0 : index
      %191 = vector.load %arg9[%c0_120, %c0_121, %c0_122] : memref<4x8x1xf32, #tpu.memory_space<vmem>>, vector<4x8x1xf32>
      tpu.vector_store %arg9[%c0_120, %c0_121, %c0_122], %190 {strides = array<i32>} : memref<4x8x1xf32, #tpu.memory_space<vmem>>, vector<4x8x1xf32>,
      %cst_123 = arith.constant 0.000000e+00 : f32
      %192 = vector.broadcast %cst_123 : f32 to vector<4x8x1xf32>
      %c0_124 = arith.constant 0 : index
      %c0_125 = arith.constant 0 : index
      %c0_126 = arith.constant 0 : index
      %193 = vector.load %arg10[%c0_124, %c0_125, %c0_126] : memref<4x8x1xf32, #tpu.memory_space<vmem>>, vector<4x8x1xf32>
      tpu.vector_store %arg10[%c0_124, %c0_125, %c0_126], %192 {strides = array<i32>} : memref<4x8x1xf32, #tpu.memory_space<vmem>>, vector<4x8x1xf32>,
      %cst_127 = arith.constant 0.000000e+00 : f32
      %194 = vector.broadcast %cst_127 : f32 to vector<4x8x8xf32>
      %c0_128 = arith.constant 0 : index
      %c0_129 = arith.constant 0 : index
      %c0_130 = arith.constant 0 : index
      %195 = vector.load %arg11[%c0_128, %c0_129, %c0_130] : memref<4x8x8xf32, #tpu.memory_space<vmem>>, vector<4x8x8xf32>
      tpu.vector_store %arg11[%c0_128, %c0_129, %c0_130], %194 {strides = array<i32>} : memref<4x8x8xf32, #tpu.memory_space<vmem>>, vector<4x8x8xf32>,
    } else {
    }
    %c0 = arith.constant 0 : index
    %c0_1 = arith.constant 0 : index
    %c0_2 = arith.constant 0 : index
    %3 = vector.load %arg3[%c0, %c0_1, %c0_2] : memref<1x8x32xf32, #tpu.memory_space<vmem>>, vector<1x8x32xf32>
    %4 = vector.shape_cast %3 : vector<1x8x32xf32> to vector<8x32xf32>
    %c0_3 = arith.constant 0 : index
    %c0_4 = arith.constant 0 : index
    %c0_5 = arith.constant 0 : index
    %5 = vector.load %arg4[%c0_3, %c0_4, %c0_5] : memref<1x8x32xf32, #tpu.memory_space<vmem>>, vector<1x8x32xf32>
    %6 = vector.shape_cast %5 : vector<1x8x32xf32> to vector<8x32xf32>
    %c0_6 = arith.constant 0 : index
    %c0_7 = arith.constant 0 : index
    %c0_8 = arith.constant 0 : index
    %7 = vector.load %arg5[%c0_6, %c0_7, %c0_8] : memref<1x8x32xf32, #tpu.memory_space<vmem>>, vector<1x8x32xf32>
    %8 = vector.shape_cast %7 : vector<1x8x32xf32> to vector<8x32xf32>
    %c0_9 = arith.constant 0 : index
    %c0_10 = arith.constant 0 : index
    %c0_11 = arith.constant 0 : index
    %c0_12 = arith.constant 0 : index
    %9 = vector.load %arg6[%c0_9, %c0_10, %c0_11, %c0_12] : memref<1x1x8x8xf32, #tpu.memory_space<vmem>>, vector<1x1x8x8xf32>
    %10 = vector.shape_cast %9 : vector<1x1x8x8xf32> to vector<8x8xf32>
    %11 = vector.extract_strided_slice %4 {offsets = [0, 0], sizes = [8, 8], strides = [1, 1]} : vector<8x32xf32> to vector<8x8xf32>
    %12 = vector.extract_strided_slice %6 {offsets = [0, 0], sizes = [8, 8], strides = [1, 1]} : vector<8x32xf32> to vector<8x8xf32>
    %13 = vector.extract_strided_slice %8 {offsets = [0, 0], sizes = [8, 8], strides = [1, 1]} : vector<8x32xf32> to vector<8x8xf32>
    %cst = arith.constant dense<0.000000e+00> : vector<8x8xf32>
    %14 = tpu.matmul %11, %12, %cst {dimension_numbers = #tpu.dot_dimension_numbers<[1], [1], [0], [0], [0, 0, 1, 0], [], []>} : vector<8x8xf32>, vector<8x8xf32>, vector<8x8xf32> -> vector<8x8xf32>
    %cst_13 = arith.constant 0.353553385 : f32
    %15 = vector.broadcast %cst_13 : f32 to vector<8x8xf32>
    %16 = arith.mulf %14, %15 : vector<8x8xf32>
    %17 = arith.addf %16, %10 : vector<8x8xf32>
    %c0_14 = arith.constant 0 : index
    %c0_15 = arith.constant 0 : index
    %c0_16 = arith.constant 0 : index
    %18 = vector.load %arg9[%c0_14, %c0_15, %c0_16] : memref<4x8x1xf32, #tpu.memory_space<vmem>>, vector<1x8x1xf32>
    %19 = vector.shape_cast %18 : vector<1x8x1xf32> to vector<8x1xf32>
    %cst_17 = arith.constant dense<0xFF800000> : vector<8xf32>
    %20 = vector.multi_reduction <maximumf>, %17, %cst_17 [1] : vector<8x8xf32> to vector<8xf32>
    %21 = vector.shape_cast %20 : vector<8xf32> to vector<8x1xf32>
    %22 = arith.maximumf %19, %21 : vector<8x1xf32>
    %23 = arith.subf %19, %22 : vector<8x1xf32>
    %24 = math.exp %23 : vector<8x1xf32>
    %25 = vector.broadcast %22 : vector<8x1xf32> to vector<8x8xf32>
    %26 = arith.subf %17, %25 : vector<8x8xf32>
    %27 = math.exp %26 : vector<8x8xf32>
    %c0_18 = arith.constant 0 : index
    %c0_19 = arith.constant 0 : index
    %c0_20 = arith.constant 0 : index
    %28 = vector.load %arg10[%c0_18, %c0_19, %c0_20] : memref<4x8x1xf32, #tpu.memory_space<vmem>>, vector<1x8x1xf32>
    %29 = vector.shape_cast %28 : vector<1x8x1xf32> to vector<8x1xf32>
    %30 = arith.mulf %24, %29 : vector<8x1xf32>
    %cst_21 = arith.constant dense<0.000000e+00> : vector<8xf32>
    %31 = vector.multi_reduction <add>, %27, %cst_21 [1] : vector<8x8xf32> to vector<8xf32>
    %32 = vector.shape_cast %31 : vector<8xf32> to vector<8x1xf32>
    %33 = arith.addf %30, %32 : vector<8x1xf32>
    %cst_22 = arith.constant dense<0.000000e+00> : vector<8x8xf32>
    %34 = tpu.matmul %27, %13, %cst_22 {dimension_numbers = #tpu.dot_dimension_numbers<[1], [0], [0], [1], [0, 0, 1, 1], [], []>} : vector<8x8xf32>, vector<8x8xf32>, vector<8x8xf32> -> vector<8x8xf32>
    %c0_23 = arith.constant 0 : index
    %c0_24 = arith.constant 0 : index
    %c0_25 = arith.constant 0 : index
    %35 = vector.load %arg11[%c0_23, %c0_24, %c0_25] : memref<4x8x8xf32, #tpu.memory_space<vmem>>, vector<1x8x8xf32>
    %36 = vector.shape_cast %35 : vector<1x8x8xf32> to vector<8x8xf32>
    %37 = vector.broadcast %24 : vector<8x1xf32> to vector<8x8xf32>
    %38 = arith.mulf %37, %36 : vector<8x8xf32>
    %39 = arith.addf %38, %34 : vector<8x8xf32>
    %c0_26 = arith.constant 0 : index
    %c0_27 = arith.constant 0 : index
    %c0_28 = arith.constant 0 : index
    %40 = vector.load %arg11[%c0_26, %c0_27, %c0_28] : memref<4x8x8xf32, #tpu.memory_space<vmem>>, vector<1x8x8xf32>
    %41 = vector.shape_cast %40 : vector<1x8x8xf32> to vector<8x8xf32>
    %42 = vector.shape_cast %39 : vector<8x8xf32> to vector<1x8x8xf32>
    tpu.vector_store %arg11[%c0_26, %c0_27, %c0_28], %42 {strides = array<i32>} : memref<4x8x8xf32, #tpu.memory_space<vmem>>, vector<1x8x8xf32>,
    %c0_29 = arith.constant 0 : index
    %c0_30 = arith.constant 0 : index
    %c0_31 = arith.constant 0 : index
    %43 = vector.load %arg9[%c0_29, %c0_30, %c0_31] : memref<4x8x1xf32, #tpu.memory_space<vmem>>, vector<1x8x1xf32>
    %44 = vector.shape_cast %43 : vector<1x8x1xf32> to vector<8x1xf32>
    %45 = vector.shape_cast %22 : vector<8x1xf32> to vector<1x8x1xf32>
    tpu.vector_store %arg9[%c0_29, %c0_30, %c0_31], %45 {strides = array<i32>} : memref<4x8x1xf32, #tpu.memory_space<vmem>>, vector<1x8x1xf32>,
    %c0_32 = arith.constant 0 : index
    %c0_33 = arith.constant 0 : index
    %c0_34 = arith.constant 0 : index
    %46 = vector.load %arg10[%c0_32, %c0_33, %c0_34] : memref<4x8x1xf32, #tpu.memory_space<vmem>>, vector<1x8x1xf32>
    %47 = vector.shape_cast %46 : vector<1x8x1xf32> to vector<8x1xf32>
    %48 = vector.shape_cast %33 : vector<8x1xf32> to vector<1x8x1xf32>
    tpu.vector_store %arg10[%c0_32, %c0_33, %c0_34], %48 {strides = array<i32>} : memref<4x8x1xf32, #tpu.memory_space<vmem>>, vector<1x8x1xf32>,
    %49 = tpu.reciprocal %33 : vector<8x1xf32> -> vector<8x1xf32>
    %50 = vector.broadcast %49 : vector<8x1xf32> to vector<8x8xf32>
    %51 = arith.mulf %27, %50 : vector<8x8xf32>
    %c0_35 = arith.constant 0 : index
    %c0_36 = arith.constant 0 : index
    %c0_37 = arith.constant 0 : index
    %c0_38 = arith.constant 0 : index
    %52 = vector.load %arg8[%c0_35, %c0_36, %c0_37, %c0_38] : memref<1x4x8x8xf32, #tpu.memory_space<vmem>>, vector<1x1x8x8xf32>
    %53 = vector.shape_cast %52 : vector<1x1x8x8xf32> to vector<8x8xf32>
    %54 = vector.shape_cast %51 : vector<8x8xf32> to vector<1x1x8x8xf32>
    tpu.vector_store %arg8[%c0_35, %c0_36, %c0_37, %c0_38], %54 {strides = array<i32>} : memref<1x4x8x8xf32, #tpu.memory_space<vmem>>, vector<1x1x8x8xf32>,
    %55 = vector.extract_strided_slice %4 {offsets = [0, 8], sizes = [8, 8], strides = [1, 1]} : vector<8x32xf32> to vector<8x8xf32>
    %56 = vector.extract_strided_slice %6 {offsets = [0, 8], sizes = [8, 8], strides = [1, 1]} : vector<8x32xf32> to vector<8x8xf32>
    %57 = vector.extract_strided_slice %8 {offsets = [0, 8], sizes = [8, 8], strides = [1, 1]} : vector<8x32xf32> to vector<8x8xf32>
    %cst_39 = arith.constant dense<0.000000e+00> : vector<8x8xf32>
    %58 = tpu.matmul %55, %56, %cst_39 {dimension_numbers = #tpu.dot_dimension_numbers<[1], [1], [0], [0], [0, 0, 1, 0], [], []>} : vector<8x8xf32>, vector<8x8xf32>, vector<8x8xf32> -> vector<8x8xf32>
    %cst_40 = arith.constant 0.353553385 : f32
    %59 = vector.broadcast %cst_40 : f32 to vector<8x8xf32>
    %60 = arith.mulf %58, %59 : vector<8x8xf32>
    %61 = arith.addf %60, %10 : vector<8x8xf32>
    %c1 = arith.constant 1 : index
    %c0_41 = arith.constant 0 : index
    %c0_42 = arith.constant 0 : index
    %62 = vector.load %arg9[%c1, %c0_41, %c0_42] : memref<4x8x1xf32, #tpu.memory_space<vmem>>, vector<1x8x1xf32>
    %63 = vector.shape_cast %62 : vector<1x8x1xf32> to vector<8x1xf32>
    %cst_43 = arith.constant dense<0xFF800000> : vector<8xf32>
    %64 = vector.multi_reduction <maximumf>, %61, %cst_43 [1] : vector<8x8xf32> to vector<8xf32>
    %65 = vector.shape_cast %64 : vector<8xf32> to vector<8x1xf32>
    %66 = arith.maximumf %63, %65 : vector<8x1xf32>
    %67 = arith.subf %63, %66 : vector<8x1xf32>
    %68 = math.exp %67 : vector<8x1xf32>
    %69 = vector.broadcast %66 : vector<8x1xf32> to vector<8x8xf32>
    %70 = arith.subf %61, %69 : vector<8x8xf32>
    %71 = math.exp %70 : vector<8x8xf32>
    %c1_44 = arith.constant 1 : index
    %c0_45 = arith.constant 0 : index
    %c0_46 = arith.constant 0 : index
    %72 = vector.load %arg10[%c1_44, %c0_45, %c0_46] : memref<4x8x1xf32, #tpu.memory_space<vmem>>, vector<1x8x1xf32>
    %73 = vector.shape_cast %72 : vector<1x8x1xf32> to vector<8x1xf32>
    %74 = arith.mulf %68, %73 : vector<8x1xf32>
    %cst_47 = arith.constant dense<0.000000e+00> : vector<8xf32>
    %75 = vector.multi_reduction <add>, %71, %cst_47 [1] : vector<8x8xf32> to vector<8xf32>
    %76 = vector.shape_cast %75 : vector<8xf32> to vector<8x1xf32>
    %77 = arith.addf %74, %76 : vector<8x1xf32>
    %cst_48 = arith.constant dense<0.000000e+00> : vector<8x8xf32>
    %78 = tpu.matmul %71, %57, %cst_48 {dimension_numbers = #tpu.dot_dimension_numbers<[1], [0], [0], [1], [0, 0, 1, 1], [], []>} : vector<8x8xf32>, vector<8x8xf32>, vector<8x8xf32> -> vector<8x8xf32>
    %c1_49 = arith.constant 1 : index
    %c0_50 = arith.constant 0 : index
    %c0_51 = arith.constant 0 : index
    %79 = vector.load %arg11[%c1_49, %c0_50, %c0_51] : memref<4x8x8xf32, #tpu.memory_space<vmem>>, vector<1x8x8xf32>
    %80 = vector.shape_cast %79 : vector<1x8x8xf32> to vector<8x8xf32>
    %81 = vector.broadcast %68 : vector<8x1xf32> to vector<8x8xf32>
    %82 = arith.mulf %81, %80 : vector<8x8xf32>
    %83 = arith.addf %82, %78 : vector<8x8xf32>
    %c1_52 = arith.constant 1 : index
    %c0_53 = arith.constant 0 : index
    %c0_54 = arith.constant 0 : index
    %84 = vector.load %arg11[%c1_52, %c0_53, %c0_54] : memref<4x8x8xf32, #tpu.memory_space<vmem>>, vector<1x8x8xf32>
    %85 = vector.shape_cast %84 : vector<1x8x8xf32> to vector<8x8xf32>
    %86 = vector.shape_cast %83 : vector<8x8xf32> to vector<1x8x8xf32>
    tpu.vector_store %arg11[%c1_52, %c0_53, %c0_54], %86 {strides = array<i32>} : memref<4x8x8xf32, #tpu.memory_space<vmem>>, vector<1x8x8xf32>,
    %c1_55 = arith.constant 1 : index
    %c0_56 = arith.constant 0 : index
    %c0_57 = arith.constant 0 : index
    %87 = vector.load %arg9[%c1_55, %c0_56, %c0_57] : memref<4x8x1xf32, #tpu.memory_space<vmem>>, vector<1x8x1xf32>
    %88 = vector.shape_cast %87 : vector<1x8x1xf32> to vector<8x1xf32>
    %89 = vector.shape_cast %66 : vector<8x1xf32> to vector<1x8x1xf32>
    tpu.vector_store %arg9[%c1_55, %c0_56, %c0_57], %89 {strides = array<i32>} : memref<4x8x1xf32, #tpu.memory_space<vmem>>, vector<1x8x1xf32>,
    %c1_58 = arith.constant 1 : index
    %c0_59 = arith.constant 0 : index
    %c0_60 = arith.constant 0 : index
    %90 = vector.load %arg10[%c1_58, %c0_59, %c0_60] : memref<4x8x1xf32, #tpu.memory_space<vmem>>, vector<1x8x1xf32>
    %91 = vector.shape_cast %90 : vector<1x8x1xf32> to vector<8x1xf32>
    %92 = vector.shape_cast %77 : vector<8x1xf32> to vector<1x8x1xf32>
    tpu.vector_store %arg10[%c1_58, %c0_59, %c0_60], %92 {strides = array<i32>} : memref<4x8x1xf32, #tpu.memory_space<vmem>>, vector<1x8x1xf32>,
    %93 = tpu.reciprocal %77 : vector<8x1xf32> -> vector<8x1xf32>
    %94 = vector.broadcast %93 : vector<8x1xf32> to vector<8x8xf32>
    %95 = arith.mulf %71, %94 : vector<8x8xf32>
    %c0_61 = arith.constant 0 : index
    %c1_62 = arith.constant 1 : index
    %c0_63 = arith.constant 0 : index
    %c0_64 = arith.constant 0 : index
    %96 = vector.load %arg8[%c0_61, %c1_62, %c0_63, %c0_64] : memref<1x4x8x8xf32, #tpu.memory_space<vmem>>, vector<1x1x8x8xf32>
    %97 = vector.shape_cast %96 : vector<1x1x8x8xf32> to vector<8x8xf32>
    %98 = vector.shape_cast %95 : vector<8x8xf32> to vector<1x1x8x8xf32>
    tpu.vector_store %arg8[%c0_61, %c1_62, %c0_63, %c0_64], %98 {strides = array<i32>} : memref<1x4x8x8xf32, #tpu.memory_space<vmem>>, vector<1x1x8x8xf32>,
    %99 = vector.extract_strided_slice %4 {offsets = [0, 16], sizes = [8, 8], strides = [1, 1]} : vector<8x32xf32> to vector<8x8xf32>
    %100 = vector.extract_strided_slice %6 {offsets = [0, 16], sizes = [8, 8], strides = [1, 1]} : vector<8x32xf32> to vector<8x8xf32>
    %101 = vector.extract_strided_slice %8 {offsets = [0, 16], sizes = [8, 8], strides = [1, 1]} : vector<8x32xf32> to vector<8x8xf32>
    %cst_65 = arith.constant dense<0.000000e+00> : vector<8x8xf32>
    %102 = tpu.matmul %99, %100, %cst_65 {dimension_numbers = #tpu.dot_dimension_numbers<[1], [1], [0], [0], [0, 0, 1, 0], [], []>} : vector<8x8xf32>, vector<8x8xf32>, vector<8x8xf32> -> vector<8x8xf32>
    %cst_66 = arith.constant 0.353553385 : f32
    %103 = vector.broadcast %cst_66 : f32 to vector<8x8xf32>
    %104 = arith.mulf %102, %103 : vector<8x8xf32>
    %105 = arith.addf %104, %10 : vector<8x8xf32>
    %c2 = arith.constant 2 : index
    %c0_67 = arith.constant 0 : index
    %c0_68 = arith.constant 0 : index
    %106 = vector.load %arg9[%c2, %c0_67, %c0_68] : memref<4x8x1xf32, #tpu.memory_space<vmem>>, vector<1x8x1xf32>
    %107 = vector.shape_cast %106 : vector<1x8x1xf32> to vector<8x1xf32>
    %cst_69 = arith.constant dense<0xFF800000> : vector<8xf32>
    %108 = vector.multi_reduction <maximumf>, %105, %cst_69 [1] : vector<8x8xf32> to vector<8xf32>
    %109 = vector.shape_cast %108 : vector<8xf32> to vector<8x1xf32>
    %110 = arith.maximumf %107, %109 : vector<8x1xf32>
    %111 = arith.subf %107, %110 : vector<8x1xf32>
    %112 = math.exp %111 : vector<8x1xf32>
    %113 = vector.broadcast %110 : vector<8x1xf32> to vector<8x8xf32>
    %114 = arith.subf %105, %113 : vector<8x8xf32>
    %115 = math.exp %114 : vector<8x8xf32>
    %c2_70 = arith.constant 2 : index
    %c0_71 = arith.constant 0 : index
    %c0_72 = arith.constant 0 : index
    %116 = vector.load %arg10[%c2_70, %c0_71, %c0_72] : memref<4x8x1xf32, #tpu.memory_space<vmem>>, vector<1x8x1xf32>
    %117 = vector.shape_cast %116 : vector<1x8x1xf32> to vector<8x1xf32>
    %118 = arith.mulf %112, %117 : vector<8x1xf32>
    %cst_73 = arith.constant dense<0.000000e+00> : vector<8xf32>
    %119 = vector.multi_reduction <add>, %115, %cst_73 [1] : vector<8x8xf32> to vector<8xf32>
    %120 = vector.shape_cast %119 : vector<8xf32> to vector<8x1xf32>
    %121 = arith.addf %118, %120 : vector<8x1xf32>
    %cst_74 = arith.constant dense<0.000000e+00> : vector<8x8xf32>
    %122 = tpu.matmul %115, %101, %cst_74 {dimension_numbers = #tpu.dot_dimension_numbers<[1], [0], [0], [1], [0, 0, 1, 1], [], []>} : vector<8x8xf32>, vector<8x8xf32>, vector<8x8xf32> -> vector<8x8xf32>
    %c2_75 = arith.constant 2 : index
    %c0_76 = arith.constant 0 : index
    %c0_77 = arith.constant 0 : index
    %123 = vector.load %arg11[%c2_75, %c0_76, %c0_77] : memref<4x8x8xf32, #tpu.memory_space<vmem>>, vector<1x8x8xf32>
    %124 = vector.shape_cast %123 : vector<1x8x8xf32> to vector<8x8xf32>
    %125 = vector.broadcast %112 : vector<8x1xf32> to vector<8x8xf32>
    %126 = arith.mulf %125, %124 : vector<8x8xf32>
    %127 = arith.addf %126, %122 : vector<8x8xf32>
    %c2_78 = arith.constant 2 : index
    %c0_79 = arith.constant 0 : index
    %c0_80 = arith.constant 0 : index
    %128 = vector.load %arg11[%c2_78, %c0_79, %c0_80] : memref<4x8x8xf32, #tpu.memory_space<vmem>>, vector<1x8x8xf32>
    %129 = vector.shape_cast %128 : vector<1x8x8xf32> to vector<8x8xf32>
    %130 = vector.shape_cast %127 : vector<8x8xf32> to vector<1x8x8xf32>
    tpu.vector_store %arg11[%c2_78, %c0_79, %c0_80], %130 {strides = array<i32>} : memref<4x8x8xf32, #tpu.memory_space<vmem>>, vector<1x8x8xf32>,
    %c2_81 = arith.constant 2 : index
    %c0_82 = arith.constant 0 : index
    %c0_83 = arith.constant 0 : index
    %131 = vector.load %arg9[%c2_81, %c0_82, %c0_83] : memref<4x8x1xf32, #tpu.memory_space<vmem>>, vector<1x8x1xf32>
    %132 = vector.shape_cast %131 : vector<1x8x1xf32> to vector<8x1xf32>
    %133 = vector.shape_cast %110 : vector<8x1xf32> to vector<1x8x1xf32>
    tpu.vector_store %arg9[%c2_81, %c0_82, %c0_83], %133 {strides = array<i32>} : memref<4x8x1xf32, #tpu.memory_space<vmem>>, vector<1x8x1xf32>,
    %c2_84 = arith.constant 2 : index
    %c0_85 = arith.constant 0 : index
    %c0_86 = arith.constant 0 : index
    %134 = vector.load %arg10[%c2_84, %c0_85, %c0_86] : memref<4x8x1xf32, #tpu.memory_space<vmem>>, vector<1x8x1xf32>
    %135 = vector.shape_cast %134 : vector<1x8x1xf32> to vector<8x1xf32>
    %136 = vector.shape_cast %121 : vector<8x1xf32> to vector<1x8x1xf32>
    tpu.vector_store %arg10[%c2_84, %c0_85, %c0_86], %136 {strides = array<i32>} : memref<4x8x1xf32, #tpu.memory_space<vmem>>, vector<1x8x1xf32>,
    %137 = tpu.reciprocal %121 : vector<8x1xf32> -> vector<8x1xf32>
    %138 = vector.broadcast %137 : vector<8x1xf32> to vector<8x8xf32>
    %139 = arith.mulf %115, %138 : vector<8x8xf32>
    %c0_87 = arith.constant 0 : index
    %c2_88 = arith.constant 2 : index
    %c0_89 = arith.constant 0 : index
    %c0_90 = arith.constant 0 : index
    %140 = vector.load %arg8[%c0_87, %c2_88, %c0_89, %c0_90] : memref<1x4x8x8xf32, #tpu.memory_space<vmem>>, vector<1x1x8x8xf32>
    %141 = vector.shape_cast %140 : vector<1x1x8x8xf32> to vector<8x8xf32>
    %142 = vector.shape_cast %139 : vector<8x8xf32> to vector<1x1x8x8xf32>
    tpu.vector_store %arg8[%c0_87, %c2_88, %c0_89, %c0_90], %142 {strides = array<i32>} : memref<1x4x8x8xf32, #tpu.memory_space<vmem>>, vector<1x1x8x8xf32>,
    %143 = vector.extract_strided_slice %4 {offsets = [0, 24], sizes = [8, 8], strides = [1, 1]} : vector<8x32xf32> to vector<8x8xf32>
    %144 = vector.extract_strided_slice %6 {offsets = [0, 24], sizes = [8, 8], strides = [1, 1]} : vector<8x32xf32> to vector<8x8xf32>
    %145 = vector.extract_strided_slice %8 {offsets = [0, 24], sizes = [8, 8], strides = [1, 1]} : vector<8x32xf32> to vector<8x8xf32>
    %cst_91 = arith.constant dense<0.000000e+00> : vector<8x8xf32>
    %146 = tpu.matmul %143, %144, %cst_91 {dimension_numbers = #tpu.dot_dimension_numbers<[1], [1], [0], [0], [0, 0, 1, 0], [], []>} : vector<8x8xf32>, vector<8x8xf32>, vector<8x8xf32> -> vector<8x8xf32>
    %cst_92 = arith.constant 0.353553385 : f32
    %147 = vector.broadcast %cst_92 : f32 to vector<8x8xf32>
    %148 = arith.mulf %146, %147 : vector<8x8xf32>
    %149 = arith.addf %148, %10 : vector<8x8xf32>
    %c3 = arith.constant 3 : index
    %c0_93 = arith.constant 0 : index
    %c0_94 = arith.constant 0 : index
    %150 = vector.load %arg9[%c3, %c0_93, %c0_94] : memref<4x8x1xf32, #tpu.memory_space<vmem>>, vector<1x8x1xf32>
    %151 = vector.shape_cast %150 : vector<1x8x1xf32> to vector<8x1xf32>
    %cst_95 = arith.constant dense<0xFF800000> : vector<8xf32>
    %152 = vector.multi_reduction <maximumf>, %149, %cst_95 [1] : vector<8x8xf32> to vector<8xf32>
    %153 = vector.shape_cast %152 : vector<8xf32> to vector<8x1xf32>
    %154 = arith.maximumf %151, %153 : vector<8x1xf32>
    %155 = arith.subf %151, %154 : vector<8x1xf32>
    %156 = math.exp %155 : vector<8x1xf32>
    %157 = vector.broadcast %154 : vector<8x1xf32> to vector<8x8xf32>
    %158 = arith.subf %149, %157 : vector<8x8xf32>
    %159 = math.exp %158 : vector<8x8xf32>
    %c3_96 = arith.constant 3 : index
    %c0_97 = arith.constant 0 : index
    %c0_98 = arith.constant 0 : index
    %160 = vector.load %arg10[%c3_96, %c0_97, %c0_98] : memref<4x8x1xf32, #tpu.memory_space<vmem>>, vector<1x8x1xf32>
    %161 = vector.shape_cast %160 : vector<1x8x1xf32> to vector<8x1xf32>
    %162 = arith.mulf %156, %161 : vector<8x1xf32>
    %cst_99 = arith.constant dense<0.000000e+00> : vector<8xf32>
    %163 = vector.multi_reduction <add>, %159, %cst_99 [1] : vector<8x8xf32> to vector<8xf32>
    %164 = vector.shape_cast %163 : vector<8xf32> to vector<8x1xf32>
    %165 = arith.addf %162, %164 : vector<8x1xf32>
    %cst_100 = arith.constant dense<0.000000e+00> : vector<8x8xf32>
    %166 = tpu.matmul %159, %145, %cst_100 {dimension_numbers = #tpu.dot_dimension_numbers<[1], [0], [0], [1], [0, 0, 1, 1], [], []>} : vector<8x8xf32>, vector<8x8xf32>, vector<8x8xf32> -> vector<8x8xf32>
    %c3_101 = arith.constant 3 : index
    %c0_102 = arith.constant 0 : index
    %c0_103 = arith.constant 0 : index
    %167 = vector.load %arg11[%c3_101, %c0_102, %c0_103] : memref<4x8x8xf32, #tpu.memory_space<vmem>>, vector<1x8x8xf32>
    %168 = vector.shape_cast %167 : vector<1x8x8xf32> to vector<8x8xf32>
    %169 = vector.broadcast %156 : vector<8x1xf32> to vector<8x8xf32>
    %170 = arith.mulf %169, %168 : vector<8x8xf32>
    %171 = arith.addf %170, %166 : vector<8x8xf32>
    %c3_104 = arith.constant 3 : index
    %c0_105 = arith.constant 0 : index
    %c0_106 = arith.constant 0 : index
    %172 = vector.load %arg11[%c3_104, %c0_105, %c0_106] : memref<4x8x8xf32, #tpu.memory_space<vmem>>, vector<1x8x8xf32>
    %173 = vector.shape_cast %172 : vector<1x8x8xf32> to vector<8x8xf32>
    %174 = vector.shape_cast %171 : vector<8x8xf32> to vector<1x8x8xf32>
    tpu.vector_store %arg11[%c3_104, %c0_105, %c0_106], %174 {strides = array<i32>} : memref<4x8x8xf32, #tpu.memory_space<vmem>>, vector<1x8x8xf32>,
    %c3_107 = arith.constant 3 : index
    %c0_108 = arith.constant 0 : index
    %c0_109 = arith.constant 0 : index
    %175 = vector.load %arg9[%c3_107, %c0_108, %c0_109] : memref<4x8x1xf32, #tpu.memory_space<vmem>>, vector<1x8x1xf32>
    %176 = vector.shape_cast %175 : vector<1x8x1xf32> to vector<8x1xf32>
    %177 = vector.shape_cast %154 : vector<8x1xf32> to vector<1x8x1xf32>
    tpu.vector_store %arg9[%c3_107, %c0_108, %c0_109], %177 {strides = array<i32>} : memref<4x8x1xf32, #tpu.memory_space<vmem>>, vector<1x8x1xf32>,
    %c3_110 = arith.constant 3 : index
    %c0_111 = arith.constant 0 : index
    %c0_112 = arith.constant 0 : index
    %178 = vector.load %arg10[%c3_110, %c0_111, %c0_112] : memref<4x8x1xf32, #tpu.memory_space<vmem>>, vector<1x8x1xf32>
    %179 = vector.shape_cast %178 : vector<1x8x1xf32> to vector<8x1xf32>
    %180 = vector.shape_cast %165 : vector<8x1xf32> to vector<1x8x1xf32>
    tpu.vector_store %arg10[%c3_110, %c0_111, %c0_112], %180 {strides = array<i32>} : memref<4x8x1xf32, #tpu.memory_space<vmem>>, vector<1x8x1xf32>,
    %181 = tpu.reciprocal %165 : vector<8x1xf32> -> vector<8x1xf32>
    %182 = vector.broadcast %181 : vector<8x1xf32> to vector<8x8xf32>
    %183 = arith.mulf %159, %182 : vector<8x8xf32>
    %c0_113 = arith.constant 0 : index
    %c3_114 = arith.constant 3 : index
    %c0_115 = arith.constant 0 : index
    %c0_116 = arith.constant 0 : index
    %184 = vector.load %arg8[%c0_113, %c3_114, %c0_115, %c0_116] : memref<1x4x8x8xf32, #tpu.memory_space<vmem>>, vector<1x1x8x8xf32>
    %185 = vector.shape_cast %184 : vector<1x1x8x8xf32> to vector<8x8xf32>
    %186 = vector.shape_cast %183 : vector<8x8xf32> to vector<1x1x8x8xf32>
    tpu.vector_store %arg8[%c0_113, %c3_114, %c0_115, %c0_116], %186 {strides = array<i32>} : memref<1x4x8x8xf32, #tpu.memory_space<vmem>>, vector<1x1x8x8xf32>,
    %c0_i32_117 = arith.constant 0 : i32
    %187 = arith.cmpi eq, %arg2, %c0_i32_117 : i32
    %188 = arith.extui %187 : i1 to i32
    %c0_i32_118 = arith.constant 0 : i32
    %189 = arith.cmpi ne, %188, %c0_i32_118 : i32
    scf.if %189 {
      %c0_119 = arith.constant 0 : index
      %c0_120 = arith.constant 0 : index
      %c0_121 = arith.constant 0 : index
      %190 = vector.load %arg10[%c0_119, %c0_120, %c0_121] : memref<4x8x1xf32, #tpu.memory_space<vmem>>, vector<1x8x1xf32>
      %191 = vector.shape_cast %190 : vector<1x8x1xf32> to vector<8x1xf32>
      %192 = tpu.reciprocal %191 : vector<8x1xf32> -> vector<8x1xf32>
      %c0_122 = arith.constant 0 : index
      %c0_123 = arith.constant 0 : index
      %c0_124 = arith.constant 0 : index
      %193 = vector.load %arg11[%c0_122, %c0_123, %c0_124] : memref<4x8x8xf32, #tpu.memory_space<vmem>>, vector<1x8x8xf32>
      %194 = vector.shape_cast %193 : vector<1x8x8xf32> to vector<8x8xf32>
      %195 = vector.broadcast %192 : vector<8x1xf32> to vector<8x8xf32>
      %196 = arith.mulf %194, %195 : vector<8x8xf32>
      %c1_125 = arith.constant 1 : index
      %c0_126 = arith.constant 0 : index
      %c0_127 = arith.constant 0 : index
      %197 = vector.load %arg10[%c1_125, %c0_126, %c0_127] : memref<4x8x1xf32, #tpu.memory_space<vmem>>, vector<1x8x1xf32>
      %198 = vector.shape_cast %197 : vector<1x8x1xf32> to vector<8x1xf32>
      %199 = tpu.reciprocal %198 : vector<8x1xf32> -> vector<8x1xf32>
      %c1_128 = arith.constant 1 : index
      %c0_129 = arith.constant 0 : index
      %c0_130 = arith.constant 0 : index
      %200 = vector.load %arg11[%c1_128, %c0_129, %c0_130] : memref<4x8x8xf32, #tpu.memory_space<vmem>>, vector<1x8x8xf32>
      %201 = vector.shape_cast %200 : vector<1x8x8xf32> to vector<8x8xf32>
      %202 = vector.broadcast %199 : vector<8x1xf32> to vector<8x8xf32>
      %203 = arith.mulf %201, %202 : vector<8x8xf32>
      %c2_131 = arith.constant 2 : index
      %c0_132 = arith.constant 0 : index
      %c0_133 = arith.constant 0 : index
      %204 = vector.load %arg10[%c2_131, %c0_132, %c0_133] : memref<4x8x1xf32, #tpu.memory_space<vmem>>, vector<1x8x1xf32>
      %205 = vector.shape_cast %204 : vector<1x8x1xf32> to vector<8x1xf32>
      %206 = tpu.reciprocal %205 : vector<8x1xf32> -> vector<8x1xf32>
      %c2_134 = arith.constant 2 : index
      %c0_135 = arith.constant 0 : index
      %c0_136 = arith.constant 0 : index
      %207 = vector.load %arg11[%c2_134, %c0_135, %c0_136] : memref<4x8x8xf32, #tpu.memory_space<vmem>>, vector<1x8x8xf32>
      %208 = vector.shape_cast %207 : vector<1x8x8xf32> to vector<8x8xf32>
      %209 = vector.broadcast %206 : vector<8x1xf32> to vector<8x8xf32>
      %210 = arith.mulf %208, %209 : vector<8x8xf32>
      %c3_137 = arith.constant 3 : index
      %c0_138 = arith.constant 0 : index
      %c0_139 = arith.constant 0 : index
      %211 = vector.load %arg10[%c3_137, %c0_138, %c0_139] : memref<4x8x1xf32, #tpu.memory_space<vmem>>, vector<1x8x1xf32>
      %212 = vector.shape_cast %211 : vector<1x8x1xf32> to vector<8x1xf32>
      %213 = tpu.reciprocal %212 : vector<8x1xf32> -> vector<8x1xf32>
      %c3_140 = arith.constant 3 : index
      %c0_141 = arith.constant 0 : index
      %c0_142 = arith.constant 0 : index
      %214 = vector.load %arg11[%c3_140, %c0_141, %c0_142] : memref<4x8x8xf32, #tpu.memory_space<vmem>>, vector<1x8x8xf32>
      %215 = vector.shape_cast %214 : vector<1x8x8xf32> to vector<8x8xf32>
      %216 = vector.broadcast %213 : vector<8x1xf32> to vector<8x8xf32>
      %217 = arith.mulf %215, %216 : vector<8x8xf32>
      %218 = tpu.concatenate %196, %203, %210, %217 in 1 : vector<8x8xf32>, vector<8x8xf32>, vector<8x8xf32>, vector<8x8xf32> -> vector<8x32xf32>
      %c0_143 = arith.constant 0 : index
      %c0_144 = arith.constant 0 : index
      %c0_145 = arith.constant 0 : index
      %219 = vector.load %arg7[%c0_143, %c0_144, %c0_145] : memref<1x8x32xf32, #tpu.memory_space<vmem>>, vector<1x8x32xf32>
      %220 = vector.shape_cast %219 : vector<1x8x32xf32> to vector<8x32xf32>
      %221 = vector.shape_cast %218 : vector<8x32xf32> to vector<1x8x32xf32>
      tpu.vector_store %arg7[%c0_143, %c0_144, %c0_145], %221 {strides = array<i32>} : memref<1x8x32xf32, #tpu.memory_space<vmem>>, vector<1x8x32xf32>,
    } else {
    }
    return
  }
  func.func @transform_0(%arg0: i32, %arg1: i32, %arg2: i32) -> (i32, i32, i32) {
    %c0_i32 = arith.constant 0 : i32
    %c0_i32_0 = arith.constant 0 : i32
    return %arg0, %arg1, %c0_i32 : i32, i32, i32
  }
  func.func @transform_1(%arg0: i32, %arg1: i32, %arg2: i32) -> (i32, i32, i32) {
    %c0_i32 = arith.constant 0 : i32
    %c0_i32_0 = arith.constant 0 : i32
    return %arg0, %arg2, %c0_i32 : i32, i32, i32
  }
  func.func @transform_2(%arg0: i32, %arg1: i32, %arg2: i32) -> (i32, i32, i32) {
    %c0_i32 = arith.constant 0 : i32
    %c0_i32_0 = arith.constant 0 : i32
    return %arg0, %arg2, %c0_i32 : i32, i32, i32
  }
  func.func @transform_3(%arg0: i32, %arg1: i32, %arg2: i32) -> (i32, i32, i32, i32) {
    %c0_i32 = arith.constant 0 : i32
    %c0_i32_0 = arith.constant 0 : i32
    return %arg0, %c0_i32, %arg1, %arg2 : i32, i32, i32, i32
  }
  func.func @transform_4(%arg0: i32, %arg1: i32, %arg2: i32) -> (i32, i32, i32) {
    %c0_i32 = arith.constant 0 : i32
    %c0_i32_0 = arith.constant 0 : i32
    return %arg0, %arg1, %c0_i32 : i32, i32, i32
  }
  func.func @transform_5(%arg0: i32, %arg1: i32, %arg2: i32) -> (i32, i32, i32, i32) {
    %c0_i32 = arith.constant 0 : i32
    %c0_i32_0 = arith.constant 0 : i32
    %c0_i32_1 = arith.constant 0 : i32
    return %arg0, %c0_i32, %arg1, %c0_i32_0 : i32, i32, i32, i32
  }
}

</mosaic_0001>

<llo_original>
// kernel: tpu_custom_call.1
$region0: #{tpu_custom_call.1}
  #allocation0 [shape = 'u32[]', space=smem, size = 0x4, offset = 0x4, fixed_abs, tag = 'smem constant byte address 0x4 - core index']
  #allocation1 [shape = 'u32[72,128]{1,0:T(1,128)}', space=vmem, size = 0x9000, scoped, tag = 'internal scratch']
  #allocation2 [shape = 'f32[4,8,1]{2,1,0:T(8,128)}', space=vmem, size = 0x4000, scoped, tag = 'scratch operand']
  #allocation3 [shape = 'f32[4,8,1]{2,1,0:T(8,128)}', space=vmem, size = 0x4000, scoped, tag = 'scratch operand']
  #allocation4 [shape = 'f32[4,8,8]{2,1,0:T(8,128)}', space=vmem, size = 0x4000, scoped, tag = 'scratch operand']
  %s0 = inlined_call_operand.hbm [shape: f32[2,8,32], index: 0, kind: input, shape index: {}]
  %s1 = inlined_call_operand.hbm [shape: f32[2,8,32], index: 1, kind: input, shape index: {}]
  %s2 = inlined_call_operand.hbm [shape: f32[2,8,32], index: 2, kind: input, shape index: {}]
  %s3 = inlined_call_operand.hbm [shape: f32[2,1,8,8], index: 3, kind: input, shape index: {}]
  %s4 = inlined_call_operand.hbm [shape: f32[2,8,32], index: 4, kind: output, shape index: {0}]
  %s5 = inlined_call_operand.hbm [shape: f32[2,4,8,8], index: 5, kind: output, shape index: {1}]
  %6 = xla_tuple %s4, %s5
  %s7 = sld [smem:[#allocation0]]
  $region81: #{tpu_custom_call.1} parent=0
    _
  %s9 = ssub.s32 1, %s7
  %s10 = scalar_select 0, %s9, %s7
  $region1: #{tpu_custom_call.1} parent=0
    #allocation5 [shape = 'u8[8192]{0}', space=vmem, size = 0x2000, scoped, tag = 'input window, operand 0']
    #allocation6 [shape = 's32[2]{0}', space=sflag, size = 0x8, scoped, tag = 'scoped memory for tpu_custom_call.1']
    #allocation7 [shape = 's32[2]{0}', space=sflag, size = 0x8, scoped, tag = 'scoped memory for tpu_custom_call.1']
    #allocation8 [shape = 'u8[8192]{0}', space=vmem, size = 0x2000, scoped, tag = 'input window, operand 1']
    #allocation9 [shape = 's32[2]{0}', space=sflag, size = 0x8, scoped, tag = 'scoped memory for tpu_custom_call.1']
    #allocation10 [shape = 'u8[8192]{0}', space=vmem, size = 0x2000, scoped, tag = 'input window, operand 2']
    #allocation11 [shape = 'u8[8192]{0}', space=vmem, size = 0x2000, scoped, tag = 'input window, operand 3']
    #allocation12 [shape = 's32[2]{0}', space=sflag, size = 0x8, scoped, tag = 'scoped memory for tpu_custom_call.1']
    #allocation13 [shape = 'u8[8192]{0}', space=vmem, size = 0x2000, scoped, tag = 'output window, operand 0']
    #allocation14 [shape = 'u8[32768]{0}', space=vmem, size = 0x8000, scoped, tag = 'output window, operand 1']
    #allocation15 [shape = 's32[2]{0}', space=sflag, size = 0x8, scoped, tag = 'scoped memory for tpu_custom_call.1']
    %11 = vsyncpa [#allocation6], 0
    %s12 = scalar_lea.sflag [#allocation6], 1
    %13 = vsyncpa %s12, 0
    %14 = vsyncpa [#allocation9], 0
    %s15 = scalar_lea.sflag [#allocation9], 1
    %16 = vsyncpa %s15, 0
    %17 = vsyncpa [#allocation12], 0
    %s18 = scalar_lea.sflag [#allocation12], 1
    %19 = vsyncpa %s18, 0
    %20 = vsyncpa [#allocation7], 0
    %s21 = scalar_lea.sflag [#allocation7], 1
    %22 = vsyncpa %s21, 0
    %23 = vsyncpa [#allocation15], 0
    %s24 = scalar_lea.sflag [#allocation15], 1
    %25 = vsyncpa %s24, 0
    loop: start=0, step=1, limit=4
    $region2: #{tpu_custom_call.1} parent=1 // loop_pre_header
      _
    $region3: #{tpu_custom_call.1} parent=1 // loop_header
      %s27 = sphi 0, %s31
      %p28 = scmp.ge.s32.totalorder %s27, 4
      %s34 = sphi 0, %s53
      %s35 = sphi 0, %s49
      %s36 = sphi 0, %s45
      %s37 = sphi 0, %s34
      %s38 = sphi 0, %s35
      %s39 = sphi 0, %s36
      %s40 = sphi 0, %s37
      %s41 = sphi 0, %s38
      %s42 = sphi 0, %s39
      %s58 = sphi 0, %s60
      %s61 = sphi 0, %s58
      %s62 = sphi 0, %s61
      %s78 = sphi 0, %s62
      %s86 = sphi 0, %s88
      %s89 = sphi 0, %s86
      %s90 = sphi 0, %s89
      %s106 = sphi 0, %s90
      %s114 = sphi 0, %s116
      %s117 = sphi 0, %s114
      %s118 = sphi 0, %s117
      %s134 = sphi 0, %s118
      %s144 = sphi 0, %s146
      %s147 = sphi 0, %s144
      %s148 = sphi 0, %s147
      %s164 = sphi 0, %s148
      %s172 = sphi 0, %s174
      %s175 = sphi 0, %s172
      %s176 = sphi 0, %s175
      %s192 = sphi 0, %s176
      %s200 = sphi 0, %s202
      %s203 = sphi 0, %s200
      %s204 = sphi 0, %s203
      %s220 = sphi 0, %s204
    $region4: #{tpu_custom_call.1} parent=1 // loop_header_branch
      %30 = sbr.rel (%p28) target = $region8
    $region5: #{tpu_custom_call.1} parent=1 // loop_body
      %s32 = ssub.s32 %s27, 1
      %s33 = ssub.s32 %s27, 2
      %s43 = sadd.s32 1, %s36
      %p44 = scmp.ge.s32.totalorder %s43, 1
      %s45 = scalar_select %p44, 0, %s43
      %s46 = sadd.s32 1, %s35
      %s47 = scalar_select %p44, %s46, %s35
      %p48 = scmp.ge.s32.totalorder %s47, 1
      %s49 = scalar_select %p48, 0, %s47
      %s50 = sadd.s32 1, %s34
      %s51 = scalar_select %p48, %s50, %s34
      %p52 = scmp.ge.s32.totalorder %s51, 2
      %s53 = scalar_select %p52, 0, %s51
      %s54 = ssub.s32 %s34, %s53
      %s55 = ssub.s32 %s35, %s49
      %s56 = sor.u32 %s54, %s55
      %p57 = scmp.eq.s32.totalorder %s56, 0
      %s59 = sadd.s32 %s58, 1
      %s60 = scalar_select %p57, %s58, %s59
      %p63 = pneg %p57
      %p64 = scmp.eq.s32.totalorder %s27, 1
      %p65 = por %p63, %p64
      %p66 = scmp.ne.s32.totalorder %s58, %s61
      %p67 = scmp.eq.s32.totalorder %s27, 0
      %p68 = por %p66, %p67
      %p69 = scmp.ne.s32.totalorder %s58, %s61
      %p70 = scmp.eq.s32.totalorder %s32, 1
      %p71 = por %p69, %p70
      %p72 = scmp.ne.s32.totalorder %s61, %s62
      %p73 = scmp.eq.s32.totalorder %s32, 0
      %p74 = por %p72, %p73
      %p75 = scmp.ne.s32.totalorder %s61, %s62
      %p76 = scmp.eq.s32.totalorder %s33, 1
      %p77 = por %p75, %p76
      %p79 = scmp.ne.s32.totalorder %s62, %s78
      %p80 = scmp.eq.s32.totalorder %s33, 0
      %p81 = por %p79, %p80
      %s82 = ssub.s32 %s34, %s53
      %s83 = ssub.s32 %s36, %s45
      %s84 = sor.u32 %s82, %s83
      %p85 = scmp.eq.s32.totalorder %s84, 0
      %s87 = sadd.s32 %s86, 1
      %s88 = scalar_select %p85, %s86, %s87
      %p91 = pneg %p85
      %p92 = scmp.eq.s32.totalorder %s27, 1
      %p93 = por %p91, %p92
      %p94 = scmp.ne.s32.totalorder %s86, %s89
      %p95 = scmp.eq.s32.totalorder %s27, 0
      %p96 = por %p94, %p95
      %p97 = scmp.ne.s32.totalorder %s86, %s89
      %p98 = scmp.eq.s32.totalorder %s32, 1
      %p99 = por %p97, %p98
      %p100 = scmp.ne.s32.totalorder %s89, %s90
      %p101 = scmp.eq.s32.totalorder %s32, 0
      %p102 = por %p100, %p101
      %p103 = scmp.ne.s32.totalorder %s89, %s90
      %p104 = scmp.eq.s32.totalorder %s33, 1
      %p105 = por %p103, %p104
      %p107 = scmp.ne.s32.totalorder %s90, %s106
      %p108 = scmp.eq.s32.totalorder %s33, 0
      %p109 = por %p107, %p108
      %s110 = ssub.s32 %s34, %s53
      %s111 = ssub.s32 %s36, %s45
      %s112 = sor.u32 %s110, %s111
      %p113 = scmp.eq.s32.totalorder %s112, 0
      %s115 = sadd.s32 %s114, 1
      %s116 = scalar_select %p113, %s114, %s115
      %p119 = pneg %p113
      %p120 = scmp.eq.s32.totalorder %s27, 1
      %p121 = por %p119, %p120
      %p122 = scmp.ne.s32.totalorder %s114, %s117
      %p123 = scmp.eq.s32.totalorder %s27, 0
      %p124 = por %p122, %p123
      %p125 = scmp.ne.s32.totalorder %s114, %s117
      %p126 = scmp.eq.s32.totalorder %s32, 1
      %p127 = por %p125, %p126
      %p128 = scmp.ne.s32.totalorder %s117, %s118
      %p129 = scmp.eq.s32.totalorder %s32, 0
      %p130 = por %p128, %p129
      %p131 = scmp.ne.s32.totalorder %s117, %s118
      %p132 = scmp.eq.s32.totalorder %s33, 1
      %p133 = por %p131, %p132
      %p135 = scmp.ne.s32.totalorder %s118, %s134
      %p136 = scmp.eq.s32.totalorder %s33, 0
      %p137 = por %p135, %p136
      %s138 = ssub.s32 %s34, %s53
      %s139 = ssub.s32 %s35, %s49
      %s140 = sor.u32 %s138, %s139
      %s141 = ssub.s32 %s36, %s45
      %s142 = sor.u32 %s140, %s141
      %p143 = scmp.eq.s32.totalorder %s142, 0
      %s145 = sadd.s32 %s144, 1
      %s146 = scalar_select %p143, %s144, %s145
      %p149 = pneg %p143
      %p150 = scmp.eq.s32.totalorder %s27, 1
      %p151 = por %p149, %p150
      %p152 = scmp.ne.s32.totalorder %s144, %s147
      %p153 = scmp.eq.s32.totalorder %s27, 0
      %p154 = por %p152, %p153
      %p155 = scmp.ne.s32.totalorder %s144, %s147
      %p156 = scmp.eq.s32.totalorder %s32, 1
      %p157 = por %p155, %p156
      %p158 = scmp.ne.s32.totalorder %s147, %s148
      %p159 = scmp.eq.s32.totalorder %s32, 0
      %p160 = por %p158, %p159
      %p161 = scmp.ne.s32.totalorder %s147, %s148
      %p162 = scmp.eq.s32.totalorder %s33, 1
      %p163 = por %p161, %p162
      %p165 = scmp.ne.s32.totalorder %s148, %s164
      %p166 = scmp.eq.s32.totalorder %s33, 0
      %p167 = por %p165, %p166
      %s168 = ssub.s32 %s34, %s53
      %s169 = ssub.s32 %s35, %s49
      %s170 = sor.u32 %s168, %s169
      %p171 = scmp.eq.s32.totalorder %s170, 0
      %s173 = sadd.s32 %s172, 1
      %s174 = scalar_select %p171, %s172, %s173
      %p177 = pneg %p171
      %p178 = scmp.eq.s32.totalorder %s27, 1
      %p179 = por %p177, %p178
      %p180 = scmp.ne.s32.totalorder %s172, %s175
      %p181 = scmp.eq.s32.totalorder %s27, 0
      %p182 = por %p180, %p181
      %p183 = scmp.ne.s32.totalorder %s172, %s175
      %p184 = scmp.eq.s32.totalorder %s32, 1
      %p185 = por %p183, %p184
      %p186 = scmp.ne.s32.totalorder %s175, %s176
      %p187 = scmp.eq.s32.totalorder %s32, 0
      %p188 = por %p186, %p187
      %p189 = scmp.ne.s32.totalorder %s175, %s176
      %p190 = scmp.eq.s32.totalorder %s33, 1
      %p191 = por %p189, %p190
      %p193 = scmp.ne.s32.totalorder %s176, %s192
      %p194 = scmp.eq.s32.totalorder %s33, 0
      %p195 = por %p193, %p194
      %s196 = ssub.s32 %s34, %s53
      %s197 = ssub.s32 %s35, %s49
      %s198 = sor.u32 %s196, %s197
      %p199 = scmp.eq.s32.totalorder %s198, 0
      %s201 = sadd.s32 %s200, 1
      %s202 = scalar_select %p199, %s200, %s201
      %p205 = pneg %p199
      %p206 = scmp.eq.s32.totalorder %s27, 1
      %p207 = por %p205, %p206
      %p208 = scmp.ne.s32.totalorder %s200, %s203
      %p209 = scmp.eq.s32.totalorder %s27, 0
      %p210 = por %p208, %p209
      %p211 = scmp.ne.s32.totalorder %s200, %s203
      %p212 = scmp.eq.s32.totalorder %s32, 1
      %p213 = por %p211, %p212
      %p214 = scmp.ne.s32.totalorder %s203, %s204
      %p215 = scmp.eq.s32.totalorder %s32, 0
      %p216 = por %p214, %p215
      %p217 = scmp.ne.s32.totalorder %s203, %s204
      %p218 = scmp.eq.s32.totalorder %s33, 1
      %p219 = por %p217, %p218
      %p221 = scmp.ne.s32.totalorder %s204, %s220
      %p222 = scmp.eq.s32.totalorder %s33, 0
      %p223 = por %p221, %p222
      %p224 = scmp.le.s32.totalorder 1, %s27
      %p225 = scmp.lt.s32.totalorder %s27, 3
      %p226 = pnand %p224, %p225
      %p227 = pneg %p226
      // Predicated region
      $region9: #{tpu_custom_call.1} parent=5 // pred_check
        _
      $region10: #{tpu_custom_call.1} parent=5 // pred_check_branch
        %229 = sbr.rel (%p226) target = $region12
      $region11: #{tpu_custom_call.1} parent=5 // pred_region
        %s230 = ssub.s32 %s27, 1
      $region12: #{tpu_custom_call.1} parent=5 // pred_fallthru
        _
      %p231 = scmp.lt.s32.totalorder %s27, 2
      // Predicated region
      $region13: #{tpu_custom_call.1} parent=5 // pred_check
        %p232 = pneg %p231
      $region14: #{tpu_custom_call.1} parent=5 // pred_check_branch
        %234 = sbr.rel (%p232) target = $region16
      $region15: #{tpu_custom_call.1} parent=5 // pred_region
        // Predicated region
        $region17: #{tpu_custom_call.1} parent=15 // pred_check
          %p235 = pneg %p68
        $region18: #{tpu_custom_call.1} parent=15 // pred_check_branch
          %237 = sbr.rel (%p235) target = $region20
        $region19: #{tpu_custom_call.1} parent=15 // pred_region
          %s238 = sand.u32 %s58, 1
          %s239 = scalar_lea.sflag [#allocation6], %s238
          %s240 = sand.u32 %s58, 1
          %s241 = smul.addr %s240, 8
          %s242 = scalar_lea.vmem [#allocation5], %s241
          %244 = vsyncadd %s239, 0
          %s245 = sadd.s32 %s35, %s34
          %s246 = smul.addr %s245, 8
          %s247 = scalar_lea.hbm %s0, %s246
          %s249 = sshll.u32 %s247, 4
          %s250 = int_to_ptr.hbm [resolvable:$true] %s249
          %s251 = sshll.u32 %s242, 4
          %s252 = int_to_ptr.vmem [resolvable:$true] %s251
          %254 = dma.hbm_to_vmem [thread:$0]  %s250, 128, %s252, %s239
        $region20: #{tpu_custom_call.1} parent=15 // pred_fallthru
          _
        // Predicated region
        $region21: #{tpu_custom_call.1} parent=15 // pred_check
          %p255 = pneg %p96
        $region22: #{tpu_custom_call.1} parent=15 // pred_check_branch
          %257 = sbr.rel (%p255) target = $region24
        $region23: #{tpu_custom_call.1} parent=15 // pred_region
          %s258 = sand.u32 %s27, 1
          %s259 = scalar_lea.sflag [#allocation9], %s258
          %s260 = sand.u32 %s86, 1
          %s261 = smul.addr %s260, 8
          %s262 = scalar_lea.vmem [#allocation8], %s261
          %264 = vsyncadd %s259, 0
          %s265 = sadd.s32 %s36, %s34
          %s266 = smul.addr %s265, 8
          %s267 = scalar_lea.hbm %s1, %s266
          %s269 = sshll.u32 %s267, 4
          %s270 = int_to_ptr.hbm [resolvable:$true] %s269
          %s271 = sshll.u32 %s262, 4
          %s272 = int_to_ptr.vmem [resolvable:$true] %s271
          %274 = dma.hbm_to_vmem [thread:$0]  %s270, 128, %s272, %s259
        $region24: #{tpu_custom_call.1} parent=15 // pred_fallthru
          _
        // Predicated region
        $region25: #{tpu_custom_call.1} parent=15 // pred_check
          %p275 = pneg %p124
        $region26: #{tpu_custom_call.1} parent=15 // pred_check_branch
          %277 = sbr.rel (%p275) target = $region28
        $region27: #{tpu_custom_call.1} parent=15 // pred_region
          %s278 = sand.u32 %s27, 1
          %s279 = scalar_lea.sflag [#allocation9], %s278
          %s280 = sand.u32 %s114, 1
          %s281 = smul.addr %s280, 8
          %s282 = scalar_lea.vmem [#allocation10], %s281
          %284 = vsyncadd %s279, 0
          %s285 = sadd.s32 %s36, %s34
          %s286 = smul.addr %s285, 8
          %s287 = scalar_lea.hbm %s2, %s286
          %s289 = sshll.u32 %s287, 4
          %s290 = int_to_ptr.hbm [resolvable:$true] %s289
          %s291 = sshll.u32 %s282, 4
          %s292 = int_to_ptr.vmem [resolvable:$true] %s291
          %294 = dma.hbm_to_vmem [thread:$0]  %s290, 128, %s292, %s279
        $region28: #{tpu_custom_call.1} parent=15 // pred_fallthru
          _
        // Predicated region
        $region29: #{tpu_custom_call.1} parent=15 // pred_check
          %p295 = pneg %p154
        $region30: #{tpu_custom_call.1} parent=15 // pred_check_branch
          %297 = sbr.rel (%p295) target = $region32
        $region31: #{tpu_custom_call.1} parent=15 // pred_region
          %s298 = sand.u32 %s144, 1
          %s299 = scalar_lea.sflag [#allocation12], %s298
          %s300 = sand.u32 %s144, 1
          %s301 = smul.addr %s300, 8
          %s302 = scalar_lea.vmem [#allocation11], %s301
          %304 = vsyncadd %s299, 0
          %s305 = sadd.s32 %s36, %s35
          %s306 = sadd.s32 %s305, %s34
          %s307 = smul.addr %s306, 8
          %s308 = scalar_lea.hbm %s3, %s307
          %s310 = sshll.u32 %s308, 4
          %s311 = int_to_ptr.hbm [resolvable:$true] %s310
          %s312 = sshll.u32 %s302, 4
          %s313 = int_to_ptr.vmem [resolvable:$true] %s312
          %315 = dma.hbm_to_vmem [thread:$0]  %s311, 128, %s313, %s299
        $region32: #{tpu_custom_call.1} parent=15 // pred_fallthru
          _
      $region16: #{tpu_custom_call.1} parent=5 // pred_fallthru
        _
      %p316 = scmp.le.s32.totalorder 1, %s27
      %p317 = scmp.lt.s32.totalorder %s27, 3
      %p318 = pnand %p316, %p317
      %p319 = pneg %p318
      // Predicated region
      $region33: #{tpu_custom_call.1} parent=5 // pred_check
        _
      $region34: #{tpu_custom_call.1} parent=5 // pred_check_branch
        %321 = sbr.rel (%p318) target = $region36
      $region35: #{tpu_custom_call.1} parent=5 // pred_region
        %s322 = ssub.s32 %s27, 1
        %s323 = sand.u32 %s61, 1
        %s324 = scalar_lea.sflag [#allocation6], %s323
        %s325 = sand.u32 %s61, 1
        %s326 = smul.addr %s325, 8
        %s327 = scalar_lea.vmem [#allocation5], %s326
        // Predicated region
        $region37: #{tpu_custom_call.1} parent=35 // pred_check
          %p328 = pneg %p74
        $region38: #{tpu_custom_call.1} parent=35 // pred_check_branch
          %330 = sbr.rel (%p328) target = $region40
        $region39: #{tpu_custom_call.1} parent=35 // pred_region
          %332 = dma.done %s324, 128
        $region40: #{tpu_custom_call.1} parent=35 // pred_fallthru
          _
        %s333 = sand.u32 %s32, 1
        %s334 = scalar_lea.sflag [#allocation9], %s333
        %s335 = sand.u32 %s89, 1
        %s336 = smul.addr %s335, 8
        %s337 = scalar_lea.vmem [#allocation8], %s336
        // Predicated region
        $region41: #{tpu_custom_call.1} parent=35 // pred_check
          %p338 = pneg %p102
        $region42: #{tpu_custom_call.1} parent=35 // pred_check_branch
          %340 = sbr.rel (%p338) target = $region44
        $region43: #{tpu_custom_call.1} parent=35 // pred_region
          %342 = dma.done %s334, 128
        $region44: #{tpu_custom_call.1} parent=35 // pred_fallthru
          _
        %s343 = sand.u32 %s32, 1
        %s344 = scalar_lea.sflag [#allocation9], %s343
        %s345 = sand.u32 %s117, 1
        %s346 = smul.addr %s345, 8
        %s347 = scalar_lea.vmem [#allocation10], %s346
        // Predicated region
        $region45: #{tpu_custom_call.1} parent=35 // pred_check
          %p348 = pneg %p130
        $region46: #{tpu_custom_call.1} parent=35 // pred_check_branch
          %350 = sbr.rel (%p348) target = $region48
        $region47: #{tpu_custom_call.1} parent=35 // pred_region
          %352 = dma.done %s344, 128
        $region48: #{tpu_custom_call.1} parent=35 // pred_fallthru
          _
        %s353 = sand.u32 %s147, 1
        %s354 = scalar_lea.sflag [#allocation12], %s353
        %s355 = sand.u32 %s147, 1
        %s356 = smul.addr %s355, 8
        %s357 = scalar_lea.vmem [#allocation11], %s356
        // Predicated region
        $region49: #{tpu_custom_call.1} parent=35 // pred_check
          %p358 = pneg %p160
        $region50: #{tpu_custom_call.1} parent=35 // pred_check_branch
          %360 = sbr.rel (%p358) target = $region52
        $region51: #{tpu_custom_call.1} parent=35 // pred_region
          %362 = dma.done %s354, 128
        $region52: #{tpu_custom_call.1} parent=35 // pred_fallthru
          _
        %s363 = sand.u32 %s61, 1
        %s364 = scalar_lea.sflag [#allocation6], %s363
        %s365 = sand.u32 %s61, 1
        %s366 = smul.addr %s365, 8
        %s367 = scalar_lea.vmem [#allocation5], %s366
        %p368 = pneg %p74
        %p369 = pneg %p71
        %s370 = sand.u32 %s32, 1
        %s371 = scalar_lea.sflag [#allocation9], %s370
        %s372 = sand.u32 %s89, 1
        %s373 = smul.addr %s372, 8
        %s374 = scalar_lea.vmem [#allocation8], %s373
        %p375 = pneg %p102
        %p376 = pneg %p99
        %s377 = sand.u32 %s32, 1
        %s378 = scalar_lea.sflag [#allocation9], %s377
        %s379 = sand.u32 %s117, 1
        %s380 = smul.addr %s379, 8
        %s381 = scalar_lea.vmem [#allocation10], %s380
        %p382 = pneg %p130
        %p383 = pneg %p127
        %s384 = sand.u32 %s147, 1
        %s385 = scalar_lea.sflag [#allocation12], %s384
        %s386 = sand.u32 %s147, 1
        %s387 = smul.addr %s386, 8
        %s388 = scalar_lea.vmem [#allocation11], %s387
        %p389 = pneg %p160
        %p390 = pneg %p157
        %p391 = pneg %p188
        %p392 = pneg %p185
        %s393 = sand.u32 %s175, 1
        %s394 = scalar_lea.sflag [#allocation7], %s393
        %s395 = sand.u32 %s175, 1
        %s396 = smul.addr %s395, 8
        %s397 = scalar_lea.vmem [#allocation13], %s396
        %p398 = pneg %p216
        %p399 = pneg %p213
        %s400 = sand.u32 %s203, 1
        %s401 = scalar_lea.sflag [#allocation15], %s400
        %s402 = sand.u32 %s203, 1
        %s403 = smul.addr %s402, 32
        %s404 = scalar_lea.vmem [#allocation14], %s403
        %p405 = scmp.eq.s32.totalorder %s39, 0
        // Predicated region
        $region53: #{tpu_custom_call.1} parent=35 // pred_check
          %p406 = pneg %p405
        $region54: #{tpu_custom_call.1} parent=35 // pred_check_branch
          %408 = sbr.rel (%p406) target = $region56
        $region55: #{tpu_custom_call.1} parent=35 // pred_region
          %vm409 = vcmask 7168
          %410 = vst.msk [vmem:[#allocation2] sm:$0xff] %vm409, -inf
          %411 = vst.msk [vmem:[#allocation2 + $0x8] sm:$0xff] %vm409, -inf
          %412 = vst.msk [vmem:[#allocation2 + $0x10] sm:$0xff] %vm409, -inf
          %413 = vst.msk [vmem:[#allocation2 + $0x18] sm:$0xff] %vm409, -inf
          %414 = vst.msk [vmem:[#allocation3] sm:$0xff] %vm409, 0.0
          %415 = vst.msk [vmem:[#allocation3 + $0x8] sm:$0xff] %vm409, 0.0
          %416 = vst.msk [vmem:[#allocation3 + $0x10] sm:$0xff] %vm409, 0.0
          %417 = vst.msk [vmem:[#allocation3 + $0x18] sm:$0xff] %vm409, 0.0
          %vm418 = vcmask 64512
          %419 = vst.msk [vmem:[#allocation4] sm:$0xff] %vm418, 0.0
          %420 = vst.msk [vmem:[#allocation4 + $0x8] sm:$0xff] %vm418, 0.0
          %421 = vst.msk [vmem:[#allocation4 + $0x10] sm:$0xff] %vm418, 0.0
          %422 = vst.msk [vmem:[#allocation4 + $0x18] sm:$0xff] %vm418, 0.0
        $region56: #{tpu_custom_call.1} parent=35 // pred_fallthru
          _
        %v423 = vld [vmem:[%s327] sm:$0xff]
        %v424 = vld [vmem:[%s337] sm:$0xff]
        %v425 = vld [vmem:[%s347] sm:$0xff]
        %v426 = vld [vmem:[%s357] sm:$0xff]
        %vm427 = vcmask 64512
        %v429 = vsel %vm427, %v423, 0
        %v432 = vsel %vm427, %v424, 0
        %434 = vmatpush.xpose.msra.mxu0 0.0
        %435 = vmatpush.xpose.msra.mxu0 0.0
        %436 = vmatpush.xpose.msra.mxu0 0.0
        %437 = vmatpush.xpose.msra.mxu0 0.0
        %438 = vmatpush.xpose.msra.mxu0 0.0
        %439 = vmatpush.xpose.msra.mxu0 0.0
        %440 = vmatpush.xpose.msra.mxu0 0.0
        %441 = vmatpush.xpose.msra.mxu0 0.0
        %442 = vmatpush.xpose.msra.mxu0 0.0
        %443 = vmatpush.xpose.msra.mxu0 0.0
        %444 = vmatpush.xpose.msra.mxu0 0.0
        %445 = vmatpush.xpose.msra.mxu0 0.0
        %446 = vmatpush.xpose.msra.mxu0 0.0
        %447 = vmatpush.xpose.msra.mxu0 0.0
        %448 = vmatpush.xpose.msra.mxu0 0.0
        %449 = vmatpush.xpose.msra.mxu0 %v432
        %450 = vmatmul.f32.gmra.mxu0 %v429
        %v451 = vpop.f32.mrf.mxu0
        %v452 = vadd.f32 0.0, %v451
        %453 = vdwg.mxu0
        %v454 = vmul.f32 %v452, 0.35355338
        %v455 = vadd.f32 %v454, %v426
        %v456 = vld [vmem:[#allocation2] sm:$0xff]
        %v457 = vsel %vm427, %v455, -inf
        %458 = vmax.xlane.f32.xlu0 %v457
        %v459 = vpop.xlane.xlu0 %458
        %v460 = vmax.f32 %v456, %v459
        %v461 = vsub.f32 %v456, %v460
        %v462 = vmul.f32 %v461, 1.442695
        %v463 = vpow.pop %v462
        %465 = vset.pattern.permute.xlu0 0
        %466 = vperm.xlu0 %465, %v460
        %v467 = vpop.permute.xlu0 %466
        %v469 = vsub.f32 %v455, %v467
        %v470 = vmul.f32 %v469, 1.442695
        %v471 = vpow.pop %v470
        %v472 = vld [vmem:[#allocation3] sm:$0xff]
        %v473 = vmul.f32 %v463, %v472
        %v474 = vsel %vm427, %v471, 0.0
        %475 = vadd.xlane.f32.xlu0 %v474
        %v476 = vpop.xlane.xlu0 %475
        %v477 = vadd.f32 %v473, %v476
        %v479 = vsel %vm427, %v471, 0
        %481 = vmatpush.msra.mxu0 0.0
        %482 = vmatpush.msra.mxu0 0.0
        %483 = vmatpush.msra.mxu0 0.0
        %484 = vmatpush.msra.mxu0 0.0
        %485 = vmatpush.msra.mxu0 0.0
        %486 = vmatpush.msra.mxu0 0.0
        %487 = vmatpush.msra.mxu0 0.0
        %488 = vmatpush.msra.mxu0 0.0
        %489 = vmatpush.msra.mxu0 0.0
        %490 = vmatpush.msra.mxu0 0.0
        %491 = vmatpush.msra.mxu0 0.0
        %492 = vmatpush.msra.mxu0 0.0
        %493 = vmatpush.msra.mxu0 0.0
        %494 = vmatpush.msra.mxu0 0.0
        %495 = vmatpush.msra.mxu0 0.0
        %496 = vmatpush.msra.mxu0 %v425
        %497 = vmatmul.f32.gmra.mxu0 %v479
        %v498 = vpop.f32.mrf.mxu0
        %v499 = vadd.f32 0.0, %v498
        %500 = vdwg.mxu0
        %v501 = vld [vmem:[#allocation4] sm:$0xff]
        %503 = vset.pattern.permute.xlu0 0
        %504 = vperm.xlu0 %503, %v463
        %v505 = vpop.permute.xlu0 %504
        %v507 = vmul.f32 %v505, %v501
        %v508 = vadd.f32 %v507, %v499
        %509 = vst.msk [vmem:[#allocation4] sm:$0xff] %vm427, %v508
        %vm510 = vcmask 7168
        %511 = vst.msk [vmem:[#allocation2] sm:$0xff] %vm510, %v460
        %512 = vst.msk [vmem:[#allocation3] sm:$0xff] %vm510, %v477
        %v513 = vrcp.pop %v477
        %v514 = vmul.f32 %v477, %v513
        %v515 = vsub.f32 1.0, %v514
        %v516 = vmul.f32 %v513, %v515
        %v517 = vadd.f32 %v513, %v516
        %vm518 = vweird.f32 %v477
        %vm519 = vweird.f32 %v513
        %vm520 = vmor %vm518, %vm519
        %v521 = vsel %vm520, %v513, %v517
        %v522 = vand.u32 2147483647, %v477
        %vm523 = vcmp.eq.f32.partialorder %v522, 8.507059e+37
        %v524 = vand.u32 %v477, 2147483648
        %v525 = vor.u32 1.1754944e-38, %v524
        %v526 = vsel %vm523, %v525, %v521
        %528 = vset.pattern.permute.xlu0 0
        %529 = vperm.xlu0 %528, %v526
        %v530 = vpop.permute.xlu0 %529
        %v532 = vmul.f32 %v471, %v530
        %533 = vst.msk [vmem:[%s404] sm:$0xff] %vm427, %v532
        %534 = vrot.lane.b32.xlu0 %v423, 120
        %v535 = vpop.permute.xlu0 %534
        %536 = vrot.lane.b32.xlu0 %v424, 120
        %v537 = vpop.permute.xlu0 %536
        %v538 = vsel %vm427, %v535, 0
        %v540 = vsel %vm427, %v537, 0
        %542 = vmatpush.xpose.msra.mxu0 0.0
        %543 = vmatpush.xpose.msra.mxu0 0.0
        %544 = vmatpush.xpose.msra.mxu0 0.0
        %545 = vmatpush.xpose.msra.mxu0 0.0
        %546 = vmatpush.xpose.msra.mxu0 0.0
        %547 = vmatpush.xpose.msra.mxu0 0.0
        %548 = vmatpush.xpose.msra.mxu0 0.0
        %549 = vmatpush.xpose.msra.mxu0 0.0
        %550 = vmatpush.xpose.msra.mxu0 0.0
        %551 = vmatpush.xpose.msra.mxu0 0.0
        %552 = vmatpush.xpose.msra.mxu0 0.0
        %553 = vmatpush.xpose.msra.mxu0 0.0
        %554 = vmatpush.xpose.msra.mxu0 0.0
        %555 = vmatpush.xpose.msra.mxu0 0.0
        %556 = vmatpush.xpose.msra.mxu0 0.0
        %557 = vmatpush.xpose.msra.mxu0 %v540
        %558 = vmatmul.f32.gmra.mxu0 %v538
        %v559 = vpop.f32.mrf.mxu0
        %v560 = vadd.f32 0.0, %v559
        %561 = vdwg.mxu0
        %v562 = vmul.f32 %v560, 0.35355338
        %v563 = vadd.f32 %v562, %v426
        %s564 = scalar_lea.vmem [#allocation2], 8
        %v565 = vld [vmem:[%s564] sm:$0xff]
        %v566 = vsel %vm427, %v563, -inf
        %567 = vmax.xlane.f32.xlu0 %v566
        %v568 = vpop.xlane.xlu0 %567
        %v569 = vmax.f32 %v565, %v568
        %v570 = vsub.f32 %v565, %v569
        %v571 = vmul.f32 %v570, 1.442695
        %v572 = vpow.pop %v571
        %574 = vset.pattern.permute.xlu0 0
        %575 = vperm.xlu0 %574, %v569
        %v576 = vpop.permute.xlu0 %575
        %v578 = vsub.f32 %v563, %v576
        %v579 = vmul.f32 %v578, 1.442695
        %v580 = vpow.pop %v579
        %s581 = scalar_lea.vmem [#allocation3], 8
        %v582 = vld [vmem:[%s581] sm:$0xff]
        %v583 = vmul.f32 %v572, %v582
        %v584 = vsel %vm427, %v580, 0.0
        %585 = vadd.xlane.f32.xlu0 %v584
        %v586 = vpop.xlane.xlu0 %585
        %v587 = vadd.f32 %v583, %v586
        %589 = vrot.lane.b32.xlu0 %v425, 120
        %v590 = vpop.permute.xlu0 %589
        %v593 = vsel %vm427, %v580, 0
        %595 = vmatpush.msra.mxu0 0.0
        %596 = vmatpush.msra.mxu0 0.0
        %597 = vmatpush.msra.mxu0 0.0
        %598 = vmatpush.msra.mxu0 0.0
        %599 = vmatpush.msra.mxu0 0.0
        %600 = vmatpush.msra.mxu0 0.0
        %601 = vmatpush.msra.mxu0 0.0
        %602 = vmatpush.msra.mxu0 0.0
        %603 = vmatpush.msra.mxu0 0.0
        %604 = vmatpush.msra.mxu0 0.0
        %605 = vmatpush.msra.mxu0 0.0
        %606 = vmatpush.msra.mxu0 0.0
        %607 = vmatpush.msra.mxu0 0.0
        %608 = vmatpush.msra.mxu0 0.0
        %609 = vmatpush.msra.mxu0 0.0
        %610 = vmatpush.msra.mxu0 %v590
        %611 = vmatmul.f32.gmra.mxu0 %v593
        %v612 = vpop.f32.mrf.mxu0
        %v613 = vadd.f32 0.0, %v612
        %614 = vdwg.mxu0
        %s615 = scalar_lea.vmem [#allocation4], 8
        %v616 = vld [vmem:[%s615] sm:$0xff]
        %618 = vset.pattern.permute.xlu0 0
        %619 = vperm.xlu0 %618, %v572
        %v620 = vpop.permute.xlu0 %619
        %v622 = vmul.f32 %v620, %v616
        %v623 = vadd.f32 %v622, %v613
        %624 = vst.msk [vmem:[%s615] sm:$0xff] %vm427, %v623
        %625 = vst.msk [vmem:[%s564] sm:$0xff] %vm510, %v569
        %626 = vst.msk [vmem:[%s581] sm:$0xff] %vm510, %v587
        %v627 = vrcp.pop %v587
        %v628 = vmul.f32 %v587, %v627
        %v629 = vsub.f32 1.0, %v628
        %v630 = vmul.f32 %v627, %v629
        %v631 = vadd.f32 %v627, %v630
        %vm632 = vweird.f32 %v587
        %vm633 = vweird.f32 %v627
        %vm634 = vmor %vm632, %vm633
        %v635 = vsel %vm634, %v627, %v631
        %v636 = vand.u32 2147483647, %v587
        %vm637 = vcmp.eq.f32.partialorder %v636, 8.507059e+37
        %v638 = vand.u32 %v587, 2147483648
        %v639 = vor.u32 1.1754944e-38, %v638
        %v640 = vsel %vm637, %v639, %v635
        %642 = vset.pattern.permute.xlu0 0
        %643 = vperm.xlu0 %642, %v640
        %v644 = vpop.permute.xlu0 %643
        %v646 = vmul.f32 %v580, %v644
        %s647 = scalar_lea.vmem %s404, 8 [#allocation14]
        %648 = vst.msk [vmem:[%s647] sm:$0xff] %vm427, %v646
        %649 = vrot.lane.b32.xlu0 %v423, 112
        %v650 = vpop.permute.xlu0 %649
        %651 = vrot.lane.b32.xlu0 %v424, 112
        %v652 = vpop.permute.xlu0 %651
        %v653 = vsel %vm427, %v650, 0
        %v655 = vsel %vm427, %v652, 0
        %657 = vmatpush.xpose.msra.mxu0 0.0
        %658 = vmatpush.xpose.msra.mxu0 0.0
        %659 = vmatpush.xpose.msra.mxu0 0.0
        %660 = vmatpush.xpose.msra.mxu0 0.0
        %661 = vmatpush.xpose.msra.mxu0 0.0
        %662 = vmatpush.xpose.msra.mxu0 0.0
        %663 = vmatpush.xpose.msra.mxu0 0.0
        %664 = vmatpush.xpose.msra.mxu0 0.0
        %665 = vmatpush.xpose.msra.mxu0 0.0
        %666 = vmatpush.xpose.msra.mxu0 0.0
        %667 = vmatpush.xpose.msra.mxu0 0.0
        %668 = vmatpush.xpose.msra.mxu0 0.0
        %669 = vmatpush.xpose.msra.mxu0 0.0
        %670 = vmatpush.xpose.msra.mxu0 0.0
        %671 = vmatpush.xpose.msra.mxu0 0.0
        %672 = vmatpush.xpose.msra.mxu0 %v655
        %673 = vmatmul.f32.gmra.mxu0 %v653
        %v674 = vpop.f32.mrf.mxu0
        %v675 = vadd.f32 0.0, %v674
        %676 = vdwg.mxu0
        %v677 = vmul.f32 %v675, 0.35355338
        %v678 = vadd.f32 %v677, %v426
        %s679 = scalar_lea.vmem [#allocation2], 16
        %v680 = vld [vmem:[%s679] sm:$0xff]
        %v681 = vsel %vm427, %v678, -inf
        %682 = vmax.xlane.f32.xlu0 %v681
        %v683 = vpop.xlane.xlu0 %682
        %v684 = vmax.f32 %v680, %v683
        %v685 = vsub.f32 %v680, %v684
        %v686 = vmul.f32 %v685, 1.442695
        %v687 = vpow.pop %v686
        %689 = vset.pattern.permute.xlu0 0
        %690 = vperm.xlu0 %689, %v684
        %v691 = vpop.permute.xlu0 %690
        %v693 = vsub.f32 %v678, %v691
        %v694 = vmul.f32 %v693, 1.442695
        %v695 = vpow.pop %v694
        %s696 = scalar_lea.vmem [#allocation3], 16
        %v697 = vld [vmem:[%s696] sm:$0xff]
        %v698 = vmul.f32 %v687, %v697
        %v699 = vsel %vm427, %v695, 0.0
        %700 = vadd.xlane.f32.xlu0 %v699
        %v701 = vpop.xlane.xlu0 %700
        %v702 = vadd.f32 %v698, %v701
        %703 = vrot.lane.b32.xlu0 %v425, 112
        %v704 = vpop.permute.xlu0 %703
        %v707 = vsel %vm427, %v695, 0
        %709 = vmatpush.msra.mxu0 0.0
        %710 = vmatpush.msra.mxu0 0.0
        %711 = vmatpush.msra.mxu0 0.0
        %712 = vmatpush.msra.mxu0 0.0
        %713 = vmatpush.msra.mxu0 0.0
        %714 = vmatpush.msra.mxu0 0.0
        %715 = vmatpush.msra.mxu0 0.0
        %716 = vmatpush.msra.mxu0 0.0
        %717 = vmatpush.msra.mxu0 0.0
        %718 = vmatpush.msra.mxu0 0.0
        %719 = vmatpush.msra.mxu0 0.0
        %720 = vmatpush.msra.mxu0 0.0
        %721 = vmatpush.msra.mxu0 0.0
        %722 = vmatpush.msra.mxu0 0.0
        %723 = vmatpush.msra.mxu0 0.0
        %724 = vmatpush.msra.mxu0 %v704
        %725 = vmatmul.f32.gmra.mxu0 %v707
        %v726 = vpop.f32.mrf.mxu0
        %v727 = vadd.f32 0.0, %v726
        %728 = vdwg.mxu0
        %s729 = scalar_lea.vmem [#allocation4], 16
        %v730 = vld [vmem:[%s729] sm:$0xff]
        %732 = vset.pattern.permute.xlu0 0
        %733 = vperm.xlu0 %732, %v687
        %v734 = vpop.permute.xlu0 %733
        %v736 = vmul.f32 %v734, %v730
        %v737 = vadd.f32 %v736, %v727
        %738 = vst.msk [vmem:[%s729] sm:$0xff] %vm427, %v737
        %739 = vst.msk [vmem:[%s679] sm:$0xff] %vm510, %v684
        %740 = vst.msk [vmem:[%s696] sm:$0xff] %vm510, %v702
        %v741 = vrcp.pop %v702
        %v742 = vmul.f32 %v702, %v741
        %v743 = vsub.f32 1.0, %v742
        %v744 = vmul.f32 %v741, %v743
        %v745 = vadd.f32 %v741, %v744
        %vm746 = vweird.f32 %v702
        %vm747 = vweird.f32 %v741
        %vm748 = vmor %vm746, %vm747
        %v749 = vsel %vm748, %v741, %v745
        %v750 = vand.u32 2147483647, %v702
        %vm751 = vcmp.eq.f32.partialorder %v750, 8.507059e+37
        %v752 = vand.u32 %v702, 2147483648
        %v753 = vor.u32 1.1754944e-38, %v752
        %v754 = vsel %vm751, %v753, %v749
        %756 = vset.pattern.permute.xlu0 0
        %757 = vperm.xlu0 %756, %v754
        %v758 = vpop.permute.xlu0 %757
        %v760 = vmul.f32 %v695, %v758
        %s761 = scalar_lea.vmem %s404, 16 [#allocation14]
        %762 = vst.msk [vmem:[%s761] sm:$0xff] %vm427, %v760
        %763 = vrot.lane.b32.xlu0 %v423, 104
        %v764 = vpop.permute.xlu0 %763
        %765 = vrot.lane.b32.xlu0 %v424, 104
        %v766 = vpop.permute.xlu0 %765
        %v767 = vsel %vm427, %v764, 0
        %v769 = vsel %vm427, %v766, 0
        %771 = vmatpush.xpose.msra.mxu0 0.0
        %772 = vmatpush.xpose.msra.mxu0 0.0
        %773 = vmatpush.xpose.msra.mxu0 0.0
        %774 = vmatpush.xpose.msra.mxu0 0.0
        %775 = vmatpush.xpose.msra.mxu0 0.0
        %776 = vmatpush.xpose.msra.mxu0 0.0
        %777 = vmatpush.xpose.msra.mxu0 0.0
        %778 = vmatpush.xpose.msra.mxu0 0.0
        %779 = vmatpush.xpose.msra.mxu0 0.0
        %780 = vmatpush.xpose.msra.mxu0 0.0
        %781 = vmatpush.xpose.msra.mxu0 0.0
        %782 = vmatpush.xpose.msra.mxu0 0.0
        %783 = vmatpush.xpose.msra.mxu0 0.0
        %784 = vmatpush.xpose.msra.mxu0 0.0
        %785 = vmatpush.xpose.msra.mxu0 0.0
        %786 = vmatpush.xpose.msra.mxu0 %v769
        %787 = vmatmul.f32.gmra.mxu0 %v767
        %v788 = vpop.f32.mrf.mxu0
        %v789 = vadd.f32 0.0, %v788
        %790 = vdwg.mxu0
        %v791 = vmul.f32 %v789, 0.35355338
        %v792 = vadd.f32 %v791, %v426
        %s793 = scalar_lea.vmem [#allocation2], 24
        %v794 = vld [vmem:[%s793] sm:$0xff]
        %v795 = vsel %vm427, %v792, -inf
        %796 = vmax.xlane.f32.xlu0 %v795
        %v797 = vpop.xlane.xlu0 %796
        %v798 = vmax.f32 %v794, %v797
        %v799 = vsub.f32 %v794, %v798
        %v800 = vmul.f32 %v799, 1.442695
        %v801 = vpow.pop %v800
        %803 = vset.pattern.permute.xlu0 0
        %804 = vperm.xlu0 %803, %v798
        %v805 = vpop.permute.xlu0 %804
        %v807 = vsub.f32 %v792, %v805
        %v808 = vmul.f32 %v807, 1.442695
        %v809 = vpow.pop %v808
        %s810 = scalar_lea.vmem [#allocation3], 24
        %v811 = vld [vmem:[%s810] sm:$0xff]
        %v812 = vmul.f32 %v801, %v811
        %v813 = vsel %vm427, %v809, 0.0
        %814 = vadd.xlane.f32.xlu0 %v813
        %v815 = vpop.xlane.xlu0 %814
        %v816 = vadd.f32 %v812, %v815
        %817 = vrot.lane.b32.xlu0 %v425, 104
        %v818 = vpop.permute.xlu0 %817
        %v821 = vsel %vm427, %v809, 0
        %823 = vmatpush.msra.mxu0 0.0
        %824 = vmatpush.msra.mxu0 0.0
        %825 = vmatpush.msra.mxu0 0.0
        %826 = vmatpush.msra.mxu0 0.0
        %827 = vmatpush.msra.mxu0 0.0
        %828 = vmatpush.msra.mxu0 0.0
        %829 = vmatpush.msra.mxu0 0.0
        %830 = vmatpush.msra.mxu0 0.0
        %831 = vmatpush.msra.mxu0 0.0
        %832 = vmatpush.msra.mxu0 0.0
        %833 = vmatpush.msra.mxu0 0.0
        %834 = vmatpush.msra.mxu0 0.0
        %835 = vmatpush.msra.mxu0 0.0
        %836 = vmatpush.msra.mxu0 0.0
        %837 = vmatpush.msra.mxu0 0.0
        %838 = vmatpush.msra.mxu0 %v818
        %839 = vmatmul.f32.gmra.mxu0 %v821
        %v840 = vpop.f32.mrf.mxu0
        %v841 = vadd.f32 0.0, %v840
        %842 = vdwg.mxu0
        %s843 = scalar_lea.vmem [#allocation4], 24
        %v844 = vld [vmem:[%s843] sm:$0xff]
        %846 = vset.pattern.permute.xlu0 0
        %847 = vperm.xlu0 %846, %v801
        %v848 = vpop.permute.xlu0 %847
        %v850 = vmul.f32 %v848, %v844
        %v851 = vadd.f32 %v850, %v841
        %852 = vst.msk [vmem:[%s843] sm:$0xff] %vm427, %v851
        %853 = vst.msk [vmem:[%s793] sm:$0xff] %vm510, %v798
        %854 = vst.msk [vmem:[%s810] sm:$0xff] %vm510, %v816
        %v855 = vrcp.pop %v816
        %v856 = vmul.f32 %v816, %v855
        %v857 = vsub.f32 1.0, %v856
        %v858 = vmul.f32 %v855, %v857
        %v859 = vadd.f32 %v855, %v858
        %vm860 = vweird.f32 %v816
        %vm861 = vweird.f32 %v855
        %vm862 = vmor %vm860, %vm861
        %v863 = vsel %vm862, %v855, %v859
        %v864 = vand.u32 2147483647, %v816
        %vm865 = vcmp.eq.f32.partialorder %v864, 8.507059e+37
        %v866 = vand.u32 %v816, 2147483648
        %v867 = vor.u32 1.1754944e-38, %v866
        %v868 = vsel %vm865, %v867, %v863
        %870 = vset.pattern.permute.xlu0 0
        %871 = vperm.xlu0 %870, %v868
        %v872 = vpop.permute.xlu0 %871
        %v874 = vmul.f32 %v809, %v872
        %s875 = scalar_lea.vmem %s404, 24 [#allocation14]
        %876 = vst.msk [vmem:[%s875] sm:$0xff] %vm427, %v874
        // Predicated region
        $region57: #{tpu_custom_call.1} parent=35 // pred_check
          %p877 = pneg %p405
        $region58: #{tpu_custom_call.1} parent=35 // pred_check_branch
          %879 = sbr.rel (%p877) target = $region60
        $region59: #{tpu_custom_call.1} parent=35 // pred_region
          %v880 = vld [vmem:[#allocation3] sm:$0xff]
          %v881 = vrcp.pop %v880
          %v882 = vmul.f32 %v880, %v881
          %v883 = vsub.f32 1.0, %v882
          %v884 = vmul.f32 %v881, %v883
          %v885 = vadd.f32 %v881, %v884
          %vm886 = vweird.f32 %v880
          %vm887 = vweird.f32 %v881
          %vm888 = vmor %vm886, %vm887
          %v889 = vsel %vm888, %v881, %v885
          %v890 = vand.u32 2147483647, %v880
          %vm891 = vcmp.eq.f32.partialorder %v890, 8.507059e+37
          %v892 = vand.u32 %v880, 2147483648
          %v893 = vor.u32 1.1754944e-38, %v892
          %v894 = vsel %vm891, %v893, %v889
          %v895 = vld [vmem:[#allocation4] sm:$0xff]
          %897 = vset.pattern.permute.xlu0 0
          %898 = vperm.xlu0 %897, %v894
          %v899 = vpop.permute.xlu0 %898
          %v901 = vmul.f32 %v895, %v899
          %v902 = vld [vmem:[%s581] sm:$0xff]
          %v903 = vrcp.pop %v902
          %v904 = vmul.f32 %v902, %v903
          %v905 = vsub.f32 1.0, %v904
          %v906 = vmul.f32 %v903, %v905
          %v907 = vadd.f32 %v903, %v906
          %vm908 = vweird.f32 %v902
          %vm909 = vweird.f32 %v903
          %vm910 = vmor %vm908, %vm909
          %v911 = vsel %vm910, %v903, %v907
          %v912 = vand.u32 2147483647, %v902
          %vm913 = vcmp.eq.f32.partialorder %v912, 8.507059e+37
          %v914 = vand.u32 %v902, 2147483648
          %v915 = vor.u32 1.1754944e-38, %v914
          %v916 = vsel %vm913, %v915, %v911
          %v917 = vld [vmem:[%s615] sm:$0xff]
          %919 = vset.pattern.permute.xlu0 0
          %920 = vperm.xlu0 %919, %v916
          %v921 = vpop.permute.xlu0 %920
          %v923 = vmul.f32 %v917, %v921
          %v924 = vld [vmem:[%s696] sm:$0xff]
          %v925 = vrcp.pop %v924
          %v926 = vmul.f32 %v924, %v925
          %v927 = vsub.f32 1.0, %v926
          %v928 = vmul.f32 %v925, %v927
          %v929 = vadd.f32 %v925, %v928
          %vm930 = vweird.f32 %v924
          %vm931 = vweird.f32 %v925
          %vm932 = vmor %vm930, %vm931
          %v933 = vsel %vm932, %v925, %v929
          %v934 = vand.u32 2147483647, %v924
          %vm935 = vcmp.eq.f32.partialorder %v934, 8.507059e+37
          %v936 = vand.u32 %v924, 2147483648
          %v937 = vor.u32 1.1754944e-38, %v936
          %v938 = vsel %vm935, %v937, %v933
          %v939 = vld [vmem:[%s729] sm:$0xff]
          %941 = vset.pattern.permute.xlu0 0
          %942 = vperm.xlu0 %941, %v938
          %v943 = vpop.permute.xlu0 %942
          %v945 = vmul.f32 %v939, %v943
          %v946 = vld [vmem:[%s810] sm:$0xff]
          %v947 = vrcp.pop %v946
          %v948 = vmul.f32 %v946, %v947
          %v949 = vsub.f32 1.0, %v948
          %v950 = vmul.f32 %v947, %v949
          %v951 = vadd.f32 %v947, %v950
          %vm952 = vweird.f32 %v946
          %vm953 = vweird.f32 %v947
          %vm954 = vmor %vm952, %vm953
          %v955 = vsel %vm954, %v947, %v951
          %v956 = vand.u32 2147483647, %v946
          %vm957 = vcmp.eq.f32.partialorder %v956, 8.507059e+37
          %v958 = vand.u32 %v946, 2147483648
          %v959 = vor.u32 1.1754944e-38, %v958
          %v960 = vsel %vm957, %v959, %v955
          %v961 = vld [vmem:[%s843] sm:$0xff]
          %963 = vset.pattern.permute.xlu0 0
          %964 = vperm.xlu0 %963, %v960
          %v965 = vpop.permute.xlu0 %964
          %v967 = vmul.f32 %v961, %v965
          %969 = vrot.lane.b32.xlu0 %v923, 8
          %v970 = vpop.permute.xlu0 %969
          %973 = vrot.lane.b32.xlu0 %v945, 16
          %v974 = vpop.permute.xlu0 %973
          %977 = vrot.lane.b32.xlu0 %v967, 24
          %v978 = vpop.permute.xlu0 %977
          %v980 = vsel %vm427, %v901, %v970
          %vm981 = vcmask 130048
          %v982 = vsel %vm981, %v980, %v974
          %vm983 = vcmask 195584
          %v984 = vsel %vm983, %v982, %v978
          %vm985 = vcmask 261120
          %986 = vst.msk [vmem:[%s397] sm:$0xff] %vm985, %v984
        $region60: #{tpu_custom_call.1} parent=35 // pred_fallthru
          _
        %s987 = sand.u32 %s175, 1
        %s988 = scalar_lea.sflag [#allocation7], %s987
        %s989 = sand.u32 %s175, 1
        %s990 = smul.addr %s989, 8
        %s991 = scalar_lea.vmem [#allocation13], %s990
        %s992 = sand.u32 %s203, 1
        %s993 = scalar_lea.sflag [#allocation15], %s992
        %s994 = sand.u32 %s203, 1
        %s995 = smul.addr %s994, 32
        %s996 = scalar_lea.vmem [#allocation14], %s995
        // Predicated region
        $region61: #{tpu_custom_call.1} parent=35 // pred_check
          %p997 = pneg %p185
        $region62: #{tpu_custom_call.1} parent=35 // pred_check_branch
          %999 = sbr.rel (%p997) target = $region64
        $region63: #{tpu_custom_call.1} parent=35 // pred_region
          %1001 = vsyncadd %s988, 0
          %s1002 = sadd.s32 %s38, %s37
          %s1003 = smul.addr %s1002, 8
          %s1004 = scalar_lea.hbm %s4, %s1003
          %s1006 = sshll.u32 %s991, 4
          %s1007 = int_to_ptr.vmem [resolvable:$true] %s1006
          %s1008 = sshll.u32 %s1004, 4
          %s1009 = int_to_ptr.hbm [resolvable:$true] %s1008
          %1011 = dma.vmem_to_hbm [thread:$0]  %s1007, 128, %s1009, %s988
        $region64: #{tpu_custom_call.1} parent=35 // pred_fallthru
          _
        // Predicated region
        $region65: #{tpu_custom_call.1} parent=35 // pred_check
          %p1012 = pneg %p213
        $region66: #{tpu_custom_call.1} parent=35 // pred_check_branch
          %1014 = sbr.rel (%p1012) target = $region68
        $region67: #{tpu_custom_call.1} parent=35 // pred_region
          %1016 = vsyncadd %s993, 0
          %s1017 = smul.addr %s37, 4
          %s1018 = sadd.s32 %s38, %s1017
          %s1019 = smul.addr %s1018, 8
          %s1020 = scalar_lea.hbm %s5, %s1019
          %s1021 = sshll.u32 %s996, 4
          %s1022 = int_to_ptr.vmem [resolvable:$true] %s1021
          %s1023 = sshll.u32 %s1020, 4
          %s1024 = int_to_ptr.hbm [resolvable:$true] %s1023
          %1029 = dma.vmem_to_hbm [thread:$0]  %s1022, 512, %s1024, %s993, 128, 128, 8
        $region68: #{tpu_custom_call.1} parent=35 // pred_fallthru
          _
      $region36: #{tpu_custom_call.1} parent=5 // pred_fallthru
        _
      %p1030 = scmp.le.s32.totalorder 2, %s27
      // Predicated region
      $region69: #{tpu_custom_call.1} parent=5 // pred_check
        %p1031 = pneg %p1030
      $region70: #{tpu_custom_call.1} parent=5 // pred_check_branch
        %1033 = sbr.rel (%p1031) target = $region72
      $region71: #{tpu_custom_call.1} parent=5 // pred_region
        %s1034 = ssub.s32 %s27, 2
        // Predicated region
        $region73: #{tpu_custom_call.1} parent=71 // pred_check
          %p1035 = pneg %p191
        $region74: #{tpu_custom_call.1} parent=71 // pred_check_branch
          %1037 = sbr.rel (%p1035) target = $region76
        $region75: #{tpu_custom_call.1} parent=71 // pred_region
          %s1038 = sand.u32 %s176, 1
          %s1039 = scalar_lea.sflag [#allocation7], %s1038
          %s1040 = sand.u32 %s176, 1
          %s1041 = smul.addr %s1040, 8
          %s1042 = scalar_lea.vmem [#allocation13], %s1041
          %1044 = dma.done %s1039, 128
        $region76: #{tpu_custom_call.1} parent=71 // pred_fallthru
          _
        // Predicated region
        $region77: #{tpu_custom_call.1} parent=71 // pred_check
          %p1045 = pneg %p219
        $region78: #{tpu_custom_call.1} parent=71 // pred_check_branch
          %1047 = sbr.rel (%p1045) target = $region80
        $region79: #{tpu_custom_call.1} parent=71 // pred_region
          %s1048 = sand.u32 %s204, 1
          %s1049 = scalar_lea.sflag [#allocation15], %s1048
          %s1050 = sand.u32 %s204, 1
          %s1051 = smul.addr %s1050, 32
          %s1052 = scalar_lea.vmem [#allocation14], %s1051
          %1054 = dma.done %s1049, 512
        $region80: #{tpu_custom_call.1} parent=71 // pred_fallthru
          _
      $region72: #{tpu_custom_call.1} parent=5 // pred_fallthru
        _
    $region6: #{tpu_custom_call.1} parent=1 // loop_footer
      %s31 = sadd.s32 1, %s27
    $region7: #{tpu_custom_call.1} parent=1 // loop_footer_branch
      %26 = sbr.rel target = $region3
    $region8: #{tpu_custom_call.1} parent=1 // loop_exit
      _
    %1055 = vsyncpa [#allocation6], 1
    %s1056 = scalar_lea.sflag [#allocation6], 1
    %1057 = vsyncpa %s1056, 1
    %1058 = vsyncpa [#allocation9], 1
    %s1059 = scalar_lea.sflag [#allocation9], 1
    %1060 = vsyncpa %s1059, 1
    %1061 = vsyncpa [#allocation12], 1
    %s1062 = scalar_lea.sflag [#allocation12], 1
    %1063 = vsyncpa %s1062, 1
    %1064 = vsyncpa [#allocation7], 1
    %s1065 = scalar_lea.sflag [#allocation7], 1
    %1066 = vsyncpa %s1065, 1
    %1067 = vsyncpa [#allocation15], 1
    %s1068 = scalar_lea.sflag [#allocation15], 1
    %1069 = vsyncpa %s1068, 1

</llo_original>
